<compile_context>
chip_gen: v6e
topology: v6e:2x2x1
jax: 0.10.0
libtpu: 0.0.40
codegen_flags: <defaults>
</compile_context>

<pallas_src>
import functools

import jax
import jax.numpy as jnp
import numpy as np
from jax.experimental import pallas as pl
from jax.experimental.pallas import tpu as pltpu


# ----------------------------------------------------------------------------- #
# Fused ResidualGroup kernel (one grid step per group of B_tile batch images)
# ----------------------------------------------------------------------------- #
def _residual_group_kernel(x_ref, wcat_ref, bl_ref, a1_ref, b1_ref, a2_ref,
                           b2_ref, pmat_ref, bmat_ref, mt_ref, mb_ref, o_ref,
                           *, n_blocks):
    """Lane-dense batched layout: activations are (M, W*C), M = B_tile*H.

    x_ref   : (1, M, WC)              input images of this group, stacked in M
    wcat_ref: (n_convs, 3*WC, WC)     fused banded conv weights (bf16)
    bl_ref  : (n_convs, 1, WC)        conv biases pre-tiled to the lane layout
    a1_ref  : (n_blocks, WC, Cr)      gmat @ ca_w1   (CA squeeze, lane-fused)
    b1_ref  : (n_blocks, 1, Cr)
    a2_ref  : (n_blocks, Cr, WC)      ca_w2 @ smat   (CA excite, lane-fused)
    b2_ref  : (n_blocks, 1, WC)       ca_b2 tiled over W
    pmat_ref: (B_tile, M)             per-image pooling matrix (1/(H*W) folded)
    bmat_ref: (M, B_tile)             per-image row-broadcast matrix
    mt_ref  : (M, 1)                  0 where h == 0   (top boundary)
    mb_ref  : (M, 1)                  0 where h == H-1 (bottom boundary)
    o_ref   : (1, M, WC)
    """
    M = x_ref.shape[1]
    mask_top = mt_ref[...]
    mask_bot = mb_ref[...]

    def conv3x3(x, ci):
        # 3x3 'same' conv: W-padding is baked into the banded weights,
        # H-padding / image boundaries handled by roll + boundary masks.
        x_dn = pltpu.roll(x, shift=1, axis=0) * mask_top       # row h-1
        x_up = pltpu.roll(x, shift=M - 1, axis=0) * mask_bot   # row h+1
        xp = jnp.concatenate([x_dn, x, x_up], axis=1).astype(jnp.bfloat16)
        y = jnp.dot(xp, wcat_ref[ci], preferred_element_type=jnp.float32)
        return y + bl_ref[ci]                                  # (M, WC) f32

    x0 = x_ref[0].astype(jnp.float32)                          # (M, WC)
    res = x0
    # TODO(synk): lax.fori_loop with pl.ds-indexed weights once n_blocks grows.
    for blk in range(n_blocks):                                # static unroll
        y = jnp.maximum(conv3x3(res, 2 * blk), 0.0)            # conv + ReLU
        y = conv3x3(y, 2 * blk + 1)                            # conv
        # ---- Freq_CALayer (SE-style channel attention), host-fused ----
        pool = jnp.dot(pmat_ref[...], y,
                       preferred_element_type=jnp.float32)     # (Bt, WC) GAP
        h1 = jnp.maximum(
            jnp.dot(pool, a1_ref[blk],
                    preferred_element_type=jnp.float32) + b1_ref[blk], 0.0)
        s = jax.nn.sigmoid(
            jnp.dot(h1, a2_ref[blk],
                    preferred_element_type=jnp.float32) + b2_ref[blk])  # (Bt, WC)
        s_rows = jnp.dot(bmat_ref[...], s,
                         preferred_element_type=jnp.float32)   # (M, WC)
        res = y * s_rows + res                                 # RFCAB residual
    res = conv3x3(res, 2 * n_blocks)                           # tail conv
    o_ref[0] = (res + x0).astype(o_ref.dtype)                  # group residual


# ----------------------------------------------------------------------------- #
# Host-side weight preparation
# ----------------------------------------------------------------------------- #
def _banded_conv_cat(w, W):
    """(3,3,Cin,Cout) HWIO kernel -> (3*W*Cin, W*Cout) fused banded matrix.

    Rows are the three kernel-row bands stacked: [dy=0; dy=1; dy=2].
    M[dy, (col+dx-1)*Cin + ci, col*Cout + co] = K[dy, dx, ci, co]; zero
    outside the image -> 'same' padding along W is built in."""
    w = np.asarray(w, np.float32)
    _, _, Cin, Cout = w.shape
    Mb = np.zeros((3, W * Cin, W * Cout), np.float32)
    for dy in range(3):
        for dx in range(3):
            for col in range(W):
                r = col + dx - 1
                if 0 <= r < W:
                    Mb[dy, r * Cin:(r + 1) * Cin,
                       col * Cout:(col + 1) * Cout] = w[dy, dx]
    return Mb.reshape(3 * W * Cin, W * Cout)


def _pick_batch_tile(B, H, target_m=256):
    """Largest divisor of B with B_tile*H <= target_m (MXU-friendly M)."""
    best = 1
    for t in range(1, B + 1):
        if B % t == 0 and t * H <= target_m:
            best = t
    return best


def residual_group_forward(x, params, *, batch_tile=None):
    """x: (B, H, W, C) NHWC, f32."""
    B, H, W, C = x.shape
    WC = W * C
    n_blocks = len(params["blocks"])
    n_convs = 2 * n_blocks + 1
    Cr = params["blocks"][0]["ca_w1"].shape[-1]

    Bt = batch_tile if batch_tile is not None else _pick_batch_tile(B, H)
    G = B // Bt
    M = Bt * H

    conv_ws, conv_bs = [], []
    for blk in params["blocks"]:
        conv_ws += [blk["w1"], blk["w2"]]
        conv_bs += [blk["b1"], blk["b2"]]
    conv_ws.append(params["tail_w"])
    conv_bs.append(params["tail_b"])

    # Fused banded conv weights (bf16) and pre-tiled biases (f32).
    wcat = jnp.asarray(
        np.stack([_banded_conv_cat(np.asarray(w), W) for w in conv_ws]),
        dtype=jnp.bfloat16)                                        # (n_convs, 3WC, WC)
    bl = jnp.stack([jnp.tile(b, W).reshape(1, WC)
                    for b in conv_bs]).astype(jnp.float32)          # (n_convs, 1, WC)

    # Host-fused channel attention (gather / broadcast / 1/(HW) folded in).
    a1 = jnp.stack([jnp.tile(blk["ca_w1"], (W, 1))
                    for blk in params["blocks"]])                   # (nb, WC, Cr)
    b1 = jnp.stack([blk["ca_b1"].reshape(1, Cr) for blk in params["blocks"]])
    a2 = jnp.stack([jnp.tile(blk["ca_w2"], (1, W))
                    for blk in params["blocks"]])                   # (nb, Cr, WC)
    b2 = jnp.stack([jnp.tile(blk["ca_b2"], W).reshape(1, WC)
                    for blk in params["blocks"]])                   # (nb, 1, WC)

    # Block-diagonal per-image pool / broadcast matrices for the batched M axis.
    img = np.repeat(np.arange(Bt), H)                               # image id per row
    pmat = jnp.asarray(
        (img[None, :] == np.arange(Bt)[:, None]).astype(np.float32) / (H * W))
    bmat = jnp.asarray(
        (img[:, None] == np.arange(Bt)[None, :]).astype(np.float32))

    # Per-image H-boundary masks (also stop cross-image leakage of the roll).
    rows = np.arange(M)
    mt = jnp.asarray(((rows % H) != 0).astype(np.float32).reshape(M, 1))
    mb = jnp.asarray(((rows % H) != H - 1).astype(np.float32).reshape(M, 1))

    kernel = functools.partial(_residual_group_kernel, n_blocks=n_blocks)

    x_g = x.reshape(G, M, WC)                                       # free reshape

    def const(shape):
        return pl.BlockSpec(shape, lambda g: (0,) * len(shape))

    ce = pl.CostEstimate(
        flops=2 * B * H * (3 * WC) * WC * n_convs,
        transcendentals=B * WC * n_blocks,
        bytes_accessed=int(2 * x.size * x.dtype.itemsize + 2 * wcat.size))

    out = pl.pallas_call(
        kernel,
        out_shape=jax.ShapeDtypeStruct((G, M, WC), x.dtype),
        grid=(G,),
        in_specs=[
            pl.BlockSpec((1, M, WC), lambda g: (g, 0, 0)),
            const((n_convs, 3 * WC, WC)),
            const((n_convs, 1, WC)),
            const((n_blocks, WC, Cr)),
            const((n_blocks, 1, Cr)),
            const((n_blocks, Cr, WC)),
            const((n_blocks, 1, WC)),
            const((Bt, M)),
            const((M, Bt)),
            const((M, 1)),
            const((M, 1)),
        ],
        out_specs=pl.BlockSpec((1, M, WC), lambda g: (g, 0, 0)),
        compiler_params=pltpu.CompilerParams(
            dimension_semantics=("parallel",)),
        cost_estimate=ce,
    )(x_g, wcat, bl, a1, b1, a2, b2, pmat, bmat, mt, mb)
    return out.reshape(B, H, W, C)


# ----------------------------------------------------------------------------- #
# Pure-JAX reference (same semantics as the PyTorch module)
# ----------------------------------------------------------------------------- #
def _conv_ref(x, w, b):
    y = jax.lax.conv_general_dilated(
        x, w, window_strides=(1, 1), padding="SAME",
        dimension_numbers=("NHWC", "HWIO", "NHWC"))
    return y + b.reshape(1, 1, 1, -1)


def residual_group_ref(x, params):
    res = x
    for blk in params["blocks"]:
        r = jnp.maximum(_conv_ref(res, blk["w1"], blk["b1"]), 0.0)
        r = _conv_ref(r, blk["w2"], blk["b2"])
        pool = jnp.mean(r, axis=(1, 2))                      # (B, C)
        h = jnp.maximum(pool @ blk["ca_w1"] + blk["ca_b1"], 0.0)
        s = jax.nn.sigmoid(h @ blk["ca_w2"] + blk["ca_b2"])  # (B, C)
        res = r * s[:, None, None, :] + res
    res = _conv_ref(res, params["tail_w"], params["tail_b"])
    return res + x


# ----------------------------------------------------------------------------- #
def make_params(key, n_feat, n_resblocks, ca_reduction=4):
    cr = max(n_feat // ca_reduction, 1)
    blocks = []
    for i in range(n_resblocks):
        ks = jax.random.split(jax.random.fold_in(key, i), 6)
        blocks.append(dict(
            w1=0.05 * jax.random.normal(ks[0], (3, 3, n_feat, n_feat), jnp.float32),
            b1=0.01 * jax.random.normal(ks[1], (n_feat,), jnp.float32),
            w2=0.05 * jax.random.normal(ks[2], (3, 3, n_feat, n_feat), jnp.float32),
            b2=0.01 * jax.random.normal(ks[3], (n_feat,), jnp.float32),
            ca_w1=0.1 * jax.random.normal(ks[4], (n_feat, cr), jnp.float32),
            ca_b1=jnp.zeros((cr,), jnp.float32),
            ca_w2=0.1 * jax.random.normal(ks[5], (cr, n_feat), jnp.float32),
            ca_b2=jnp.zeros((n_feat,), jnp.float32),
        ))
    kt = jax.random.fold_in(key, 1000)
    tail_w = 0.05 * jax.random.normal(kt, (3, 3, n_feat, n_feat), jnp.float32)
    tail_b = jnp.zeros((n_feat,), jnp.float32)
    return dict(blocks=blocks, tail_w=tail_w, tail_b=tail_b)


if __name__ == "__main__":
    B, H, W, C = 2, 16, 16, 8          # n_feat=8, kernel_size=3, n_resblocks=2
    n_resblocks = 2

    key = jax.random.PRNGKey(0)
    kx, kp = jax.random.split(key)
    x = jax.random.normal(kx, (B, H, W, C), jnp.float32)     # NHWC
    params = make_params(kp, C, n_resblocks)

    out = residual_group_forward(x, params)
    out = jax.block_until_ready(out)

    ref = residual_group_ref(x, params)
    # bf16 matmul weights/LHS (f32 accumulation) -> relaxed tolerance vs f32 ref.
    np.testing.assert_allclose(np.asarray(out), np.asarray(ref),
                               rtol=5e-2, atol=5e-2)
    print("KERNEL_OK")
</pallas_src>

<mosaic_0001>
module attributes {stable_mosaic.version = 11 : i64} {
  func.func @_residual_group_kernel(%arg0: i32, %arg1: memref<1x32x128xf32, #tpu.memory_space<vmem>>, %arg2: memref<5x384x128xbf16, #tpu.memory_space<vmem>>, %arg3: memref<5x1x128xf32, #tpu.memory_space<vmem>>, %arg4: memref<2x128x2xf32, #tpu.memory_space<vmem>>, %arg5: memref<2x1x2xf32, #tpu.memory_space<vmem>>, %arg6: memref<2x2x128xf32, #tpu.memory_space<vmem>>, %arg7: memref<2x1x128xf32, #tpu.memory_space<vmem>>, %arg8: memref<2x32xf32, #tpu.memory_space<vmem>>, %arg9: memref<32x2xf32, #tpu.memory_space<vmem>>, %arg10: memref<32x1xf32, #tpu.memory_space<vmem>>, %arg11: memref<32x1xf32, #tpu.memory_space<vmem>>, %arg12: memref<1x32x128xf32, #tpu.memory_space<vmem>>) attributes {dimension_semantics = [#tpu.dimension_semantics<parallel>], iteration_bounds = array<i64: 1>, scalar_prefetch = 0 : i64, scratch_operands = 0 : i64, tpu.core_type = #tpu.core_type<tc>, window_params = [{transform_indices = @transform_0, window_bounds = array<i64: 1, 32, 128>}, {pipeline_mode = #tpu.pipeline_mode<synchronous>, transform_indices = @transform_1, window_bounds = array<i64: 5, 384, 128>}, {pipeline_mode = #tpu.pipeline_mode<synchronous>, transform_indices = @transform_2, window_bounds = array<i64: 5, 1, 128>}, {pipeline_mode = #tpu.pipeline_mode<synchronous>, transform_indices = @transform_3, window_bounds = array<i64: 2, 128, 2>}, {pipeline_mode = #tpu.pipeline_mode<synchronous>, transform_indices = @transform_4, window_bounds = array<i64: 2, 1, 2>}, {pipeline_mode = #tpu.pipeline_mode<synchronous>, transform_indices = @transform_5, window_bounds = array<i64: 2, 2, 128>}, {pipeline_mode = #tpu.pipeline_mode<synchronous>, transform_indices = @transform_6, window_bounds = array<i64: 2, 1, 128>}, {pipeline_mode = #tpu.pipeline_mode<synchronous>, transform_indices = @transform_7, window_bounds = array<i64: 2, 32>}, {pipeline_mode = #tpu.pipeline_mode<synchronous>, transform_indices = @transform_8, window_bounds = array<i64: 32, 2>}, {pipeline_mode = #tpu.pipeline_mode<synchronous>, transform_indices = @transform_9, window_bounds = array<i64: 32, 1>}, {pipeline_mode = #tpu.pipeline_mode<synchronous>, transform_indices = @transform_10, window_bounds = array<i64: 32, 1>}, {transform_indices = @transform_11, window_bounds = array<i64: 1, 32, 128>}]} {
    %c0 = arith.constant 0 : index
    %c0_0 = arith.constant 0 : index
    %0 = vector.load %arg10[%c0, %c0_0] : memref<32x1xf32, #tpu.memory_space<vmem>>, vector<32x1xf32>
    %c0_1 = arith.constant 0 : index
    %c0_2 = arith.constant 0 : index
    %1 = vector.load %arg11[%c0_1, %c0_2] : memref<32x1xf32, #tpu.memory_space<vmem>>, vector<32x1xf32>
    %c0_3 = arith.constant 0 : index
    %c0_4 = arith.constant 0 : index
    %c0_5 = arith.constant 0 : index
    %2 = vector.load %arg1[%c0_3, %c0_4, %c0_5] : memref<1x32x128xf32, #tpu.memory_space<vmem>>, vector<1x32x128xf32>
    %3 = vector.shape_cast %2 : vector<1x32x128xf32> to vector<32x128xf32>
    %c1_i32 = arith.constant 1 : i32
    %4 = tpu.dynamic_rotate %3 by %c1_i32 dim 0 : vector<32x128xf32>, i32 -> vector<32x128xf32>
    %5 = vector.broadcast %0 : vector<32x1xf32> to vector<32x128xf32>
    %6 = arith.mulf %4, %5 : vector<32x128xf32>
    %c31_i32 = arith.constant 31 : i32
    %7 = tpu.dynamic_rotate %3 by %c31_i32 dim 0 : vector<32x128xf32>, i32 -> vector<32x128xf32>
    %8 = vector.broadcast %1 : vector<32x1xf32> to vector<32x128xf32>
    %9 = arith.mulf %7, %8 : vector<32x128xf32>
    %10 = tpu.concatenate %6, %3, %9 in 1 : vector<32x128xf32>, vector<32x128xf32>, vector<32x128xf32> -> vector<32x384xf32>
    %11 = arith.truncf %10 : vector<32x384xf32> to vector<32x384xbf16>
    %c0_6 = arith.constant 0 : index
    %c0_7 = arith.constant 0 : index
    %c0_8 = arith.constant 0 : index
    %12 = vector.load %arg2[%c0_6, %c0_7, %c0_8] : memref<5x384x128xbf16, #tpu.memory_space<vmem>>, vector<1x384x128xbf16>
    %13 = vector.shape_cast %12 : vector<1x384x128xbf16> to vector<384x128xbf16>
    %cst = arith.constant dense<0.000000e+00> : vector<32x128xf32>
    %14 = tpu.matmul %11, %13, %cst {dimension_numbers = #tpu.dot_dimension_numbers<[1], [0], [0], [1], [0, 0, 1, 1], [], []>} : vector<32x384xbf16>, vector<384x128xbf16>, vector<32x128xf32> -> vector<32x128xf32>
    %c0_9 = arith.constant 0 : index
    %c0_10 = arith.constant 0 : index
    %c0_11 = arith.constant 0 : index
    %15 = vector.load %arg3[%c0_9, %c0_10, %c0_11] : memref<5x1x128xf32, #tpu.memory_space<vmem>>, vector<1x1x128xf32>
    %16 = vector.shape_cast %15 : vector<1x1x128xf32> to vector<1x128xf32>
    %17 = vector.broadcast %16 : vector<1x128xf32> to vector<32x128xf32>
    %18 = arith.addf %14, %17 : vector<32x128xf32>
    %cst_12 = arith.constant 0.000000e+00 : f32
    %19 = vector.broadcast %cst_12 : f32 to vector<32x128xf32>
    %20 = arith.maximumf %18, %19 : vector<32x128xf32>
    %c1_i32_13 = arith.constant 1 : i32
    %21 = tpu.dynamic_rotate %20 by %c1_i32_13 dim 0 : vector<32x128xf32>, i32 -> vector<32x128xf32>
    %22 = vector.broadcast %0 : vector<32x1xf32> to vector<32x128xf32>
    %23 = arith.mulf %21, %22 : vector<32x128xf32>
    %c31_i32_14 = arith.constant 31 : i32
    %24 = tpu.dynamic_rotate %20 by %c31_i32_14 dim 0 : vector<32x128xf32>, i32 -> vector<32x128xf32>
    %25 = vector.broadcast %1 : vector<32x1xf32> to vector<32x128xf32>
    %26 = arith.mulf %24, %25 : vector<32x128xf32>
    %27 = tpu.concatenate %23, %20, %26 in 1 : vector<32x128xf32>, vector<32x128xf32>, vector<32x128xf32> -> vector<32x384xf32>
    %28 = arith.truncf %27 : vector<32x384xf32> to vector<32x384xbf16>
    %c1 = arith.constant 1 : index
    %c0_15 = arith.constant 0 : index
    %c0_16 = arith.constant 0 : index
    %29 = vector.load %arg2[%c1, %c0_15, %c0_16] : memref<5x384x128xbf16, #tpu.memory_space<vmem>>, vector<1x384x128xbf16>
    %30 = vector.shape_cast %29 : vector<1x384x128xbf16> to vector<384x128xbf16>
    %cst_17 = arith.constant dense<0.000000e+00> : vector<32x128xf32>
    %31 = tpu.matmul %28, %30, %cst_17 {dimension_numbers = #tpu.dot_dimension_numbers<[1], [0], [0], [1], [0, 0, 1, 1], [], []>} : vector<32x384xbf16>, vector<384x128xbf16>, vector<32x128xf32> -> vector<32x128xf32>
    %c1_18 = arith.constant 1 : index
    %c0_19 = arith.constant 0 : index
    %c0_20 = arith.constant 0 : index
    %32 = vector.load %arg3[%c1_18, %c0_19, %c0_20] : memref<5x1x128xf32, #tpu.memory_space<vmem>>, vector<1x1x128xf32>
    %33 = vector.shape_cast %32 : vector<1x1x128xf32> to vector<1x128xf32>
    %34 = vector.broadcast %33 : vector<1x128xf32> to vector<32x128xf32>
    %35 = arith.addf %31, %34 : vector<32x128xf32>
    %c0_21 = arith.constant 0 : index
    %c0_22 = arith.constant 0 : index
    %36 = vector.load %arg8[%c0_21, %c0_22] : memref<2x32xf32, #tpu.memory_space<vmem>>, vector<2x32xf32>
    %cst_23 = arith.constant dense<0.000000e+00> : vector<2x128xf32>
    %37 = tpu.matmul %36, %35, %cst_23 {dimension_numbers = #tpu.dot_dimension_numbers<[1], [0], [0], [1], [0, 0, 1, 1], [], []>} : vector<2x32xf32>, vector<32x128xf32>, vector<2x128xf32> -> vector<2x128xf32>
    %c0_24 = arith.constant 0 : index
    %c0_25 = arith.constant 0 : index
    %c0_26 = arith.constant 0 : index
    %38 = vector.load %arg4[%c0_24, %c0_25, %c0_26] : memref<2x128x2xf32, #tpu.memory_space<vmem>>, vector<1x128x2xf32>
    %39 = vector.shape_cast %38 : vector<1x128x2xf32> to vector<128x2xf32>
    %cst_27 = arith.constant dense<0.000000e+00> : vector<2x2xf32>
    %40 = tpu.matmul %37, %39, %cst_27 {dimension_numbers = #tpu.dot_dimension_numbers<[1], [0], [0], [1], [0, 0, 1, 1], [], []>} : vector<2x128xf32>, vector<128x2xf32>, vector<2x2xf32> -> vector<2x2xf32>
    %c0_28 = arith.constant 0 : index
    %c0_29 = arith.constant 0 : index
    %c0_30 = arith.constant 0 : index
    %41 = vector.load %arg5[%c0_28, %c0_29, %c0_30] : memref<2x1x2xf32, #tpu.memory_space<vmem>>, vector<1x1x2xf32>
    %42 = vector.shape_cast %41 : vector<1x1x2xf32> to vector<1x2xf32>
    %43 = vector.broadcast %42 : vector<1x2xf32> to vector<2x2xf32>
    %44 = arith.addf %40, %43 : vector<2x2xf32>
    %cst_31 = arith.constant 0.000000e+00 : f32
    %45 = vector.broadcast %cst_31 : f32 to vector<2x2xf32>
    %46 = arith.maximumf %44, %45 : vector<2x2xf32>
    %c0_32 = arith.constant 0 : index
    %c0_33 = arith.constant 0 : index
    %c0_34 = arith.constant 0 : index
    %47 = vector.load %arg6[%c0_32, %c0_33, %c0_34] : memref<2x2x128xf32, #tpu.memory_space<vmem>>, vector<1x2x128xf32>
    %48 = vector.shape_cast %47 : vector<1x2x128xf32> to vector<2x128xf32>
    %cst_35 = arith.constant dense<0.000000e+00> : vector<2x128xf32>
    %49 = tpu.matmul %46, %48, %cst_35 {dimension_numbers = #tpu.dot_dimension_numbers<[1], [0], [0], [1], [0, 0, 1, 1], [], []>} : vector<2x2xf32>, vector<2x128xf32>, vector<2x128xf32> -> vector<2x128xf32>
    %c0_36 = arith.constant 0 : index
    %c0_37 = arith.constant 0 : index
    %c0_38 = arith.constant 0 : index
    %50 = vector.load %arg7[%c0_36, %c0_37, %c0_38] : memref<2x1x128xf32, #tpu.memory_space<vmem>>, vector<1x1x128xf32>
    %51 = vector.shape_cast %50 : vector<1x1x128xf32> to vector<1x128xf32>
    %52 = vector.broadcast %51 : vector<1x128xf32> to vector<2x128xf32>
    %53 = arith.addf %49, %52 : vector<2x128xf32>
    %54 = arith.negf %53 : vector<2x128xf32>
    %55 = math.exp %54 : vector<2x128xf32>
    %cst_39 = arith.constant 1.000000e+00 : f32
    %56 = vector.broadcast %cst_39 : f32 to vector<2x128xf32>
    %57 = arith.addf %56, %55 : vector<2x128xf32>
    %58 = arith.divf %56, %57 : vector<2x128xf32>
    %c0_40 = arith.constant 0 : index
    %c0_41 = arith.constant 0 : index
    %59 = vector.load %arg9[%c0_40, %c0_41] : memref<32x2xf32, #tpu.memory_space<vmem>>, vector<32x2xf32>
    %cst_42 = arith.constant dense<0.000000e+00> : vector<32x128xf32>
    %60 = tpu.matmul %59, %58, %cst_42 {dimension_numbers = #tpu.dot_dimension_numbers<[1], [0], [0], [1], [0, 0, 1, 1], [], []>} : vector<32x2xf32>, vector<2x128xf32>, vector<32x128xf32> -> vector<32x128xf32>
    %61 = arith.mulf %35, %60 : vector<32x128xf32>
    %62 = arith.addf %61, %3 : vector<32x128xf32>
    %c1_i32_43 = arith.constant 1 : i32
    %63 = tpu.dynamic_rotate %62 by %c1_i32_43 dim 0 : vector<32x128xf32>, i32 -> vector<32x128xf32>
    %64 = vector.broadcast %0 : vector<32x1xf32> to vector<32x128xf32>
    %65 = arith.mulf %63, %64 : vector<32x128xf32>
    %c31_i32_44 = arith.constant 31 : i32
    %66 = tpu.dynamic_rotate %62 by %c31_i32_44 dim 0 : vector<32x128xf32>, i32 -> vector<32x128xf32>
    %67 = vector.broadcast %1 : vector<32x1xf32> to vector<32x128xf32>
    %68 = arith.mulf %66, %67 : vector<32x128xf32>
    %69 = tpu.concatenate %65, %62, %68 in 1 : vector<32x128xf32>, vector<32x128xf32>, vector<32x128xf32> -> vector<32x384xf32>
    %70 = arith.truncf %69 : vector<32x384xf32> to vector<32x384xbf16>
    %c2 = arith.constant 2 : index
    %c0_45 = arith.constant 0 : index
    %c0_46 = arith.constant 0 : index
    %71 = vector.load %arg2[%c2, %c0_45, %c0_46] : memref<5x384x128xbf16, #tpu.memory_space<vmem>>, vector<1x384x128xbf16>
    %72 = vector.shape_cast %71 : vector<1x384x128xbf16> to vector<384x128xbf16>
    %cst_47 = arith.constant dense<0.000000e+00> : vector<32x128xf32>
    %73 = tpu.matmul %70, %72, %cst_47 {dimension_numbers = #tpu.dot_dimension_numbers<[1], [0], [0], [1], [0, 0, 1, 1], [], []>} : vector<32x384xbf16>, vector<384x128xbf16>, vector<32x128xf32> -> vector<32x128xf32>
    %c2_48 = arith.constant 2 : index
    %c0_49 = arith.constant 0 : index
    %c0_50 = arith.constant 0 : index
    %74 = vector.load %arg3[%c2_48, %c0_49, %c0_50] : memref<5x1x128xf32, #tpu.memory_space<vmem>>, vector<1x1x128xf32>
    %75 = vector.shape_cast %74 : vector<1x1x128xf32> to vector<1x128xf32>
    %76 = vector.broadcast %75 : vector<1x128xf32> to vector<32x128xf32>
    %77 = arith.addf %73, %76 : vector<32x128xf32>
    %cst_51 = arith.constant 0.000000e+00 : f32
    %78 = vector.broadcast %cst_51 : f32 to vector<32x128xf32>
    %79 = arith.maximumf %77, %78 : vector<32x128xf32>
    %c1_i32_52 = arith.constant 1 : i32
    %80 = tpu.dynamic_rotate %79 by %c1_i32_52 dim 0 : vector<32x128xf32>, i32 -> vector<32x128xf32>
    %81 = vector.broadcast %0 : vector<32x1xf32> to vector<32x128xf32>
    %82 = arith.mulf %80, %81 : vector<32x128xf32>
    %c31_i32_53 = arith.constant 31 : i32
    %83 = tpu.dynamic_rotate %79 by %c31_i32_53 dim 0 : vector<32x128xf32>, i32 -> vector<32x128xf32>
    %84 = vector.broadcast %1 : vector<32x1xf32> to vector<32x128xf32>
    %85 = arith.mulf %83, %84 : vector<32x128xf32>
    %86 = tpu.concatenate %82, %79, %85 in 1 : vector<32x128xf32>, vector<32x128xf32>, vector<32x128xf32> -> vector<32x384xf32>
    %87 = arith.truncf %86 : vector<32x384xf32> to vector<32x384xbf16>
    %c3 = arith.constant 3 : index
    %c0_54 = arith.constant 0 : index
    %c0_55 = arith.constant 0 : index
    %88 = vector.load %arg2[%c3, %c0_54, %c0_55] : memref<5x384x128xbf16, #tpu.memory_space<vmem>>, vector<1x384x128xbf16>
    %89 = vector.shape_cast %88 : vector<1x384x128xbf16> to vector<384x128xbf16>
    %cst_56 = arith.constant dense<0.000000e+00> : vector<32x128xf32>
    %90 = tpu.matmul %87, %89, %cst_56 {dimension_numbers = #tpu.dot_dimension_numbers<[1], [0], [0], [1], [0, 0, 1, 1], [], []>} : vector<32x384xbf16>, vector<384x128xbf16>, vector<32x128xf32> -> vector<32x128xf32>
    %c3_57 = arith.constant 3 : index
    %c0_58 = arith.constant 0 : index
    %c0_59 = arith.constant 0 : index
    %91 = vector.load %arg3[%c3_57, %c0_58, %c0_59] : memref<5x1x128xf32, #tpu.memory_space<vmem>>, vector<1x1x128xf32>
    %92 = vector.shape_cast %91 : vector<1x1x128xf32> to vector<1x128xf32>
    %93 = vector.broadcast %92 : vector<1x128xf32> to vector<32x128xf32>
    %94 = arith.addf %90, %93 : vector<32x128xf32>
    %c0_60 = arith.constant 0 : index
    %c0_61 = arith.constant 0 : index
    %95 = vector.load %arg8[%c0_60, %c0_61] : memref<2x32xf32, #tpu.memory_space<vmem>>, vector<2x32xf32>
    %cst_62 = arith.constant dense<0.000000e+00> : vector<2x128xf32>
    %96 = tpu.matmul %95, %94, %cst_62 {dimension_numbers = #tpu.dot_dimension_numbers<[1], [0], [0], [1], [0, 0, 1, 1], [], []>} : vector<2x32xf32>, vector<32x128xf32>, vector<2x128xf32> -> vector<2x128xf32>
    %c1_63 = arith.constant 1 : index
    %c0_64 = arith.constant 0 : index
    %c0_65 = arith.constant 0 : index
    %97 = vector.load %arg4[%c1_63, %c0_64, %c0_65] : memref<2x128x2xf32, #tpu.memory_space<vmem>>, vector<1x128x2xf32>
    %98 = vector.shape_cast %97 : vector<1x128x2xf32> to vector<128x2xf32>
    %cst_66 = arith.constant dense<0.000000e+00> : vector<2x2xf32>
    %99 = tpu.matmul %96, %98, %cst_66 {dimension_numbers = #tpu.dot_dimension_numbers<[1], [0], [0], [1], [0, 0, 1, 1], [], []>} : vector<2x128xf32>, vector<128x2xf32>, vector<2x2xf32> -> vector<2x2xf32>
    %c1_67 = arith.constant 1 : index
    %c0_68 = arith.constant 0 : index
    %c0_69 = arith.constant 0 : index
    %100 = vector.load %arg5[%c1_67, %c0_68, %c0_69] : memref<2x1x2xf32, #tpu.memory_space<vmem>>, vector<1x1x2xf32>
    %101 = vector.shape_cast %100 : vector<1x1x2xf32> to vector<1x2xf32>
    %102 = vector.broadcast %101 : vector<1x2xf32> to vector<2x2xf32>
    %103 = arith.addf %99, %102 : vector<2x2xf32>
    %cst_70 = arith.constant 0.000000e+00 : f32
    %104 = vector.broadcast %cst_70 : f32 to vector<2x2xf32>
    %105 = arith.maximumf %103, %104 : vector<2x2xf32>
    %c1_71 = arith.constant 1 : index
    %c0_72 = arith.constant 0 : index
    %c0_73 = arith.constant 0 : index
    %106 = vector.load %arg6[%c1_71, %c0_72, %c0_73] : memref<2x2x128xf32, #tpu.memory_space<vmem>>, vector<1x2x128xf32>
    %107 = vector.shape_cast %106 : vector<1x2x128xf32> to vector<2x128xf32>
    %cst_74 = arith.constant dense<0.000000e+00> : vector<2x128xf32>
    %108 = tpu.matmul %105, %107, %cst_74 {dimension_numbers = #tpu.dot_dimension_numbers<[1], [0], [0], [1], [0, 0, 1, 1], [], []>} : vector<2x2xf32>, vector<2x128xf32>, vector<2x128xf32> -> vector<2x128xf32>
    %c1_75 = arith.constant 1 : index
    %c0_76 = arith.constant 0 : index
    %c0_77 = arith.constant 0 : index
    %109 = vector.load %arg7[%c1_75, %c0_76, %c0_77] : memref<2x1x128xf32, #tpu.memory_space<vmem>>, vector<1x1x128xf32>
    %110 = vector.shape_cast %109 : vector<1x1x128xf32> to vector<1x128xf32>
    %111 = vector.broadcast %110 : vector<1x128xf32> to vector<2x128xf32>
    %112 = arith.addf %108, %111 : vector<2x128xf32>
    %113 = arith.negf %112 : vector<2x128xf32>
    %114 = math.exp %113 : vector<2x128xf32>
    %cst_78 = arith.constant 1.000000e+00 : f32
    %115 = vector.broadcast %cst_78 : f32 to vector<2x128xf32>
    %116 = arith.addf %115, %114 : vector<2x128xf32>
    %117 = arith.divf %115, %116 : vector<2x128xf32>
    %c0_79 = arith.constant 0 : index
    %c0_80 = arith.constant 0 : index
    %118 = vector.load %arg9[%c0_79, %c0_80] : memref<32x2xf32, #tpu.memory_space<vmem>>, vector<32x2xf32>
    %cst_81 = arith.constant dense<0.000000e+00> : vector<32x128xf32>
    %119 = tpu.matmul %118, %117, %cst_81 {dimension_numbers = #tpu.dot_dimension_numbers<[1], [0], [0], [1], [0, 0, 1, 1], [], []>} : vector<32x2xf32>, vector<2x128xf32>, vector<32x128xf32> -> vector<32x128xf32>
    %120 = arith.mulf %94, %119 : vector<32x128xf32>
    %121 = arith.addf %120, %62 : vector<32x128xf32>
    %c1_i32_82 = arith.constant 1 : i32
    %122 = tpu.dynamic_rotate %121 by %c1_i32_82 dim 0 : vector<32x128xf32>, i32 -> vector<32x128xf32>
    %123 = vector.broadcast %0 : vector<32x1xf32> to vector<32x128xf32>
    %124 = arith.mulf %122, %123 : vector<32x128xf32>
    %c31_i32_83 = arith.constant 31 : i32
    %125 = tpu.dynamic_rotate %121 by %c31_i32_83 dim 0 : vector<32x128xf32>, i32 -> vector<32x128xf32>
    %126 = vector.broadcast %1 : vector<32x1xf32> to vector<32x128xf32>
    %127 = arith.mulf %125, %126 : vector<32x128xf32>
    %128 = tpu.concatenate %124, %121, %127 in 1 : vector<32x128xf32>, vector<32x128xf32>, vector<32x128xf32> -> vector<32x384xf32>
    %129 = arith.truncf %128 : vector<32x384xf32> to vector<32x384xbf16>
    %c4 = arith.constant 4 : index
    %c0_84 = arith.constant 0 : index
    %c0_85 = arith.constant 0 : index
    %130 = vector.load %arg2[%c4, %c0_84, %c0_85] : memref<5x384x128xbf16, #tpu.memory_space<vmem>>, vector<1x384x128xbf16>
    %131 = vector.shape_cast %130 : vector<1x384x128xbf16> to vector<384x128xbf16>
    %cst_86 = arith.constant dense<0.000000e+00> : vector<32x128xf32>
    %132 = tpu.matmul %129, %131, %cst_86 {dimension_numbers = #tpu.dot_dimension_numbers<[1], [0], [0], [1], [0, 0, 1, 1], [], []>} : vector<32x384xbf16>, vector<384x128xbf16>, vector<32x128xf32> -> vector<32x128xf32>
    %c4_87 = arith.constant 4 : index
    %c0_88 = arith.constant 0 : index
    %c0_89 = arith.constant 0 : index
    %133 = vector.load %arg3[%c4_87, %c0_88, %c0_89] : memref<5x1x128xf32, #tpu.memory_space<vmem>>, vector<1x1x128xf32>
    %134 = vector.shape_cast %133 : vector<1x1x128xf32> to vector<1x128xf32>
    %135 = vector.broadcast %134 : vector<1x128xf32> to vector<32x128xf32>
    %136 = arith.addf %132, %135 : vector<32x128xf32>
    %137 = arith.addf %136, %3 : vector<32x128xf32>
    %c0_90 = arith.constant 0 : index
    %c0_91 = arith.constant 0 : index
    %c0_92 = arith.constant 0 : index
    %138 = vector.load %arg12[%c0_90, %c0_91, %c0_92] : memref<1x32x128xf32, #tpu.memory_space<vmem>>, vector<1x32x128xf32>
    %139 = vector.shape_cast %138 : vector<1x32x128xf32> to vector<32x128xf32>
    %140 = vector.shape_cast %137 : vector<32x128xf32> to vector<1x32x128xf32>
    tpu.vector_store %arg12[%c0_90, %c0_91, %c0_92], %140 {strides = array<i32>} : memref<1x32x128xf32, #tpu.memory_space<vmem>>, vector<1x32x128xf32>,
    return
  }
  func.func @transform_0(%arg0: i32) -> (i32, i32, i32) {
    %c0_i32 = arith.constant 0 : i32
    %c0_i32_0 = arith.constant 0 : i32
    %c0_i32_1 = arith.constant 0 : i32
    return %arg0, %c0_i32, %c0_i32_0 : i32, i32, i32
  }
  func.func @transform_1(%arg0: i32) -> (i32, i32, i32) {
    %c0_i32 = arith.constant 0 : i32
    %c0_i32_0 = arith.constant 0 : i32
    %c0_i32_1 = arith.constant 0 : i32
    %c0_i32_2 = arith.constant 0 : i32
    return %c0_i32, %c0_i32_0, %c0_i32_1 : i32, i32, i32
  }
  func.func @transform_2(%arg0: i32) -> (i32, i32, i32) {
    %c0_i32 = arith.constant 0 : i32
    %c0_i32_0 = arith.constant 0 : i32
    %c0_i32_1 = arith.constant 0 : i32
    %c0_i32_2 = arith.constant 0 : i32
    return %c0_i32, %c0_i32_0, %c0_i32_1 : i32, i32, i32
  }
  func.func @transform_3(%arg0: i32) -> (i32, i32, i32) {
    %c0_i32 = arith.constant 0 : i32
    %c0_i32_0 = arith.constant 0 : i32
    %c0_i32_1 = arith.constant 0 : i32
    %c0_i32_2 = arith.constant 0 : i32
    return %c0_i32, %c0_i32_0, %c0_i32_1 : i32, i32, i32
  }
  func.func @transform_4(%arg0: i32) -> (i32, i32, i32) {
    %c0_i32 = arith.constant 0 : i32
    %c0_i32_0 = arith.constant 0 : i32
    %c0_i32_1 = arith.constant 0 : i32
    %c0_i32_2 = arith.constant 0 : i32
    return %c0_i32, %c0_i32_0, %c0_i32_1 : i32, i32, i32
  }
  func.func @transform_5(%arg0: i32) -> (i32, i32, i32) {
    %c0_i32 = arith.constant 0 : i32
    %c0_i32_0 = arith.constant 0 : i32
    %c0_i32_1 = arith.constant 0 : i32
    %c0_i32_2 = arith.constant 0 : i32
    return %c0_i32, %c0_i32_0, %c0_i32_1 : i32, i32, i32
  }
  func.func @transform_6(%arg0: i32) -> (i32, i32, i32) {
    %c0_i32 = arith.constant 0 : i32
    %c0_i32_0 = arith.constant 0 : i32
    %c0_i32_1 = arith.constant 0 : i32
    %c0_i32_2 = arith.constant 0 : i32
    return %c0_i32, %c0_i32_0, %c0_i32_1 : i32, i32, i32
  }
  func.func @transform_7(%arg0: i32) -> (i32, i32) {
    %c0_i32 = arith.constant 0 : i32
    %c0_i32_0 = arith.constant 0 : i32
    %c0_i32_1 = arith.constant 0 : i32
    return %c0_i32, %c0_i32_0 : i32, i32
  }
  func.func @transform_8(%arg0: i32) -> (i32, i32) {
    %c0_i32 = arith.constant 0 : i32
    %c0_i32_0 = arith.constant 0 : i32
    %c0_i32_1 = arith.constant 0 : i32
    return %c0_i32, %c0_i32_0 : i32, i32
  }
  func.func @transform_9(%arg0: i32) -> (i32, i32) {
    %c0_i32 = arith.constant 0 : i32
    %c0_i32_0 = arith.constant 0 : i32
    %c0_i32_1 = arith.constant 0 : i32
    return %c0_i32, %c0_i32_0 : i32, i32
  }
  func.func @transform_10(%arg0: i32) -> (i32, i32) {
    %c0_i32 = arith.constant 0 : i32
    %c0_i32_0 = arith.constant 0 : i32
    %c0_i32_1 = arith.constant 0 : i32
    return %c0_i32, %c0_i32_0 : i32, i32
  }
  func.func @transform_11(%arg0: i32) -> (i32, i32, i32) {
    %c0_i32 = arith.constant 0 : i32
    %c0_i32_0 = arith.constant 0 : i32
    %c0_i32_1 = arith.constant 0 : i32
    return %arg0, %c0_i32, %c0_i32_0 : i32, i32, i32
  }
}

</mosaic_0001>

<llo_original>
// kernel: tpu_custom_call.1
$region0: #{tpu_custom_call.1}
  #allocation0 [shape = 'u32[]', space=smem, size = 0x4, offset = 0x4, fixed_abs, tag = 'smem constant byte address 0x4 - core index']
  #allocation1 [shape = 'u32[144,128]{1,0:T(1,128)}', space=vmem, size = 0x12000, scoped, tag = 'internal scratch']
  %s0 = inlined_call_operand.vmem [shape: f32[1,32,128], index: 0, kind: input, shape index: {}]
  %s1 = inlined_call_operand.hbm [shape: bf16[5,384,128], index: 1, kind: input, shape index: {}]
  %s2 = inlined_call_operand.vmem [shape: f32[5,1,128], index: 2, kind: input, shape index: {}]
  %s3 = inlined_call_operand.vmem [shape: f32[2,128,2], index: 3, kind: input, shape index: {}]
  %s4 = inlined_call_operand.vmem [shape: f32[2,1,2], index: 4, kind: input, shape index: {}]
  %s5 = inlined_call_operand.vmem [shape: f32[2,2,128], index: 5, kind: input, shape index: {}]
  %s6 = inlined_call_operand.vmem [shape: f32[2,1,128], index: 6, kind: input, shape index: {}]
  %s7 = inlined_call_operand.vmem [shape: f32[2,32], index: 7, kind: input, shape index: {}]
  %s8 = inlined_call_operand.vmem [shape: f32[32,2], index: 8, kind: input, shape index: {}]
  %s9 = inlined_call_operand.vmem [shape: f32[32,1], index: 9, kind: input, shape index: {}]
  %s10 = inlined_call_operand.vmem [shape: f32[32,1], index: 10, kind: input, shape index: {}]
  %s11 = inlined_call_operand.hbm [shape: f32[1,32,128], index: 11, kind: output, shape index: {}]
  %s12 = sld [smem:[#allocation0]]
  $region58: #{tpu_custom_call.1} parent=0
    _
  %s14 = ssub.s32 1, %s12
  %s15 = scalar_select 0, %s14, %s12
  $region1: #{tpu_custom_call.1} parent=0
    #allocation2 [shape = 'u8[491520]{0}', space=vmem, size = 0x78000, scoped, tag = 'input window, operand 1, single buffered']
    #allocation3 [shape = 's32[1]{0}', space=sflag, size = 0x4, scoped, tag = 'scoped memory for tpu_custom_call.1']
    #allocation4 [shape = 's32[1]{0}', space=sflag, size = 0x4, scoped, tag = 'scoped memory for tpu_custom_call.1']
    #allocation5 [shape = 'u8[16384]{0}', space=vmem, size = 0x4000, scoped, tag = 'output window, operand 0, single buffered']
    %16 = vsyncpa [#allocation3], 0
    %17 = vsyncpa [#allocation4], 0
    // Predicated region
    $region2: #{tpu_custom_call.1} parent=1 // pred_check
      _
    $region3: #{tpu_custom_call.1} parent=1 // pred_check_branch
      %19 = sbr.rel (0) target = $region5
    $region4: #{tpu_custom_call.1} parent=1 // pred_region
      _
    $region5: #{tpu_custom_call.1} parent=1 // pred_fallthru
      _
    // Predicated region
    $region6: #{tpu_custom_call.1} parent=1 // pred_check
      _
    $region7: #{tpu_custom_call.1} parent=1 // pred_check_branch
      %21 = sbr.rel (0) target = $region9
    $region8: #{tpu_custom_call.1} parent=1 // pred_region
      %s23 = ssub.s32 15360, 15360
      %24 = vsyncadd [#allocation3], %s23
      %s25 = sshll.u32 [#allocation2], 4
      %s26 = int_to_ptr.vmem [resolvable:$true] %s25
      %31 = dma.hbm_to_vmem [thread:$0]  %s1, 15360, %s26, [#allocation3], 64, 64, 4
    $region9: #{tpu_custom_call.1} parent=1 // pred_fallthru
      _
    // Predicated region
    $region10: #{tpu_custom_call.1} parent=1 // pred_check
      _
    $region11: #{tpu_custom_call.1} parent=1 // pred_check_branch
      %33 = sbr.rel (0) target = $region13
    $region12: #{tpu_custom_call.1} parent=1 // pred_region
      _
    $region13: #{tpu_custom_call.1} parent=1 // pred_fallthru
      _
    // Predicated region
    $region14: #{tpu_custom_call.1} parent=1 // pred_check
      _
    $region15: #{tpu_custom_call.1} parent=1 // pred_check_branch
      %35 = sbr.rel (0) target = $region17
    $region16: #{tpu_custom_call.1} parent=1 // pred_region
      _
    $region17: #{tpu_custom_call.1} parent=1 // pred_fallthru
      _
    // Predicated region
    $region18: #{tpu_custom_call.1} parent=1 // pred_check
      _
    $region19: #{tpu_custom_call.1} parent=1 // pred_check_branch
      %37 = sbr.rel (0) target = $region21
    $region20: #{tpu_custom_call.1} parent=1 // pred_region
      _
    $region21: #{tpu_custom_call.1} parent=1 // pred_fallthru
      _
    // Predicated region
    $region22: #{tpu_custom_call.1} parent=1 // pred_check
      _
    $region23: #{tpu_custom_call.1} parent=1 // pred_check_branch
      %39 = sbr.rel (0) target = $region25
    $region24: #{tpu_custom_call.1} parent=1 // pred_region
      _
    $region25: #{tpu_custom_call.1} parent=1 // pred_fallthru
      _
    // Predicated region
    $region26: #{tpu_custom_call.1} parent=1 // pred_check
      _
    $region27: #{tpu_custom_call.1} parent=1 // pred_check_branch
      %41 = sbr.rel (0) target = $region29
    $region28: #{tpu_custom_call.1} parent=1 // pred_region
      _
    $region29: #{tpu_custom_call.1} parent=1 // pred_fallthru
      _
    // Predicated region
    $region30: #{tpu_custom_call.1} parent=1 // pred_check
      _
    $region31: #{tpu_custom_call.1} parent=1 // pred_check_branch
      %43 = sbr.rel (0) target = $region33
    $region32: #{tpu_custom_call.1} parent=1 // pred_region
      _
    $region33: #{tpu_custom_call.1} parent=1 // pred_fallthru
      _
    // Predicated region
    $region34: #{tpu_custom_call.1} parent=1 // pred_check
      _
    $region35: #{tpu_custom_call.1} parent=1 // pred_check_branch
      %45 = sbr.rel (0) target = $region37
    $region36: #{tpu_custom_call.1} parent=1 // pred_region
      _
    $region37: #{tpu_custom_call.1} parent=1 // pred_fallthru
      _
    // Predicated region
    $region38: #{tpu_custom_call.1} parent=1 // pred_check
      _
    $region39: #{tpu_custom_call.1} parent=1 // pred_check_branch
      %47 = sbr.rel (0) target = $region41
    $region40: #{tpu_custom_call.1} parent=1 // pred_region
      _
    $region41: #{tpu_custom_call.1} parent=1 // pred_fallthru
      _
    // Predicated region
    $region42: #{tpu_custom_call.1} parent=1 // pred_check
      _
    $region43: #{tpu_custom_call.1} parent=1 // pred_check_branch
      %49 = sbr.rel (0) target = $region45
    $region44: #{tpu_custom_call.1} parent=1 // pred_region
      _
    $region45: #{tpu_custom_call.1} parent=1 // pred_fallthru
      _
    // Predicated region
    $region46: #{tpu_custom_call.1} parent=1 // pred_check
      _
    $region47: #{tpu_custom_call.1} parent=1 // pred_check_branch
      %51 = sbr.rel (0) target = $region49
    $region48: #{tpu_custom_call.1} parent=1 // pred_region
      %52 = dma.done [#allocation3], 15360
    $region49: #{tpu_custom_call.1} parent=1 // pred_fallthru
      _
    %v54 = vld [vmem:[%s9] sm:$0xff]
    %v55 = vld [vmem:[%s9 + $0x8] sm:$0xff]
    %v56 = vld [vmem:[%s9 + $0x10] sm:$0xff]
    %v57 = vld [vmem:[%s9 + $0x18] sm:$0xff]
    %v58 = vld [vmem:[%s10] sm:$0xff]
    %v59 = vld [vmem:[%s10 + $0x8] sm:$0xff]
    %v60 = vld [vmem:[%s10 + $0x10] sm:$0xff]
    %v61 = vld [vmem:[%s10 + $0x18] sm:$0xff]
    %v62 = vld [vmem:[%s0] sm:$0xff]
    %v63 = vld [vmem:[%s0 + $0x8] sm:$0xff]
    %v64 = vld [vmem:[%s0 + $0x10] sm:$0xff]
    %v65 = vld [vmem:[%s0 + $0x18] sm:$0xff]
    %v66 = vrot.slane %v62, 7
    %v67 = vrot.slane %v63, 7
    %v68 = vrot.slane %v64, 7
    %v69 = vrot.slane %v65, 7
    %v70 = vlaneseq
    %v71 = vshrl.u32 %v70, 7
    %vm72 = vcmp.lt.s32.totalorder %v71, 1
    %v73 = vsel %vm72, %v68, %v69
    %v74 = vsel %vm72, %v67, %v68
    %v75 = vsel %vm72, %v66, %v67
    %v76 = vsel %vm72, %v69, %v66
    %78 = vset.pattern.permute.xlu0 0
    %79 = vperm.xlu0 %78, %v54
    %v80 = vpop.permute.xlu0 %79
    %83 = vset.pattern.permute.xlu0 0
    %84 = vperm.xlu0 %83, %v55
    %v85 = vpop.permute.xlu0 %84
    %88 = vset.pattern.permute.xlu0 0
    %89 = vperm.xlu0 %88, %v56
    %v90 = vpop.permute.xlu0 %89
    %93 = vset.pattern.permute.xlu0 0
    %94 = vperm.xlu0 %93, %v57
    %v95 = vpop.permute.xlu0 %94
    %v97 = vmul.f32 %v76, %v80
    %v98 = vmul.f32 %v75, %v85
    %v99 = vmul.f32 %v74, %v90
    %v100 = vmul.f32 %v73, %v95
    %v101 = vrot.slane %v62, 1
    %v102 = vrot.slane %v63, 1
    %v103 = vrot.slane %v64, 1
    %v104 = vrot.slane %v65, 1
    %vm105 = vcmp.lt.s32.totalorder %v71, 7
    %v106 = vsel %vm105, %v103, %v104
    %v107 = vsel %vm105, %v102, %v103
    %v108 = vsel %vm105, %v101, %v102
    %v109 = vsel %vm105, %v104, %v101
    %111 = vset.pattern.permute.xlu0 0
    %112 = vperm.xlu0 %111, %v58
    %v113 = vpop.permute.xlu0 %112
    %116 = vset.pattern.permute.xlu0 0
    %117 = vperm.xlu0 %116, %v59
    %v118 = vpop.permute.xlu0 %117
    %121 = vset.pattern.permute.xlu0 0
    %122 = vperm.xlu0 %121, %v60
    %v123 = vpop.permute.xlu0 %122
    %126 = vset.pattern.permute.xlu0 0
    %127 = vperm.xlu0 %126, %v61
    %v128 = vpop.permute.xlu0 %127
    %v130 = vmul.f32 %v108, %v113
    %v131 = vmul.f32 %v107, %v118
    %v132 = vmul.f32 %v106, %v123
    %v133 = vmul.f32 %v109, %v128
    %v134 = vpack.c.bf16 %v98, %v97
    %v135 = vpack.c.bf16 %v63, %v62
    %v136 = vpack.c.bf16 %v131, %v130
    %v137 = vpack.c.bf16 %v100, %v99
    %v138 = vpack.c.bf16 %v65, %v64
    %v139 = vpack.c.bf16 %v133, %v132
    %v140 = vld [vmem:[#allocation2] sm:$0xf]
    %v141 = vld [vmem:[#allocation2 + $0x4] sm:$0xf]
    %v142 = vld [vmem:[#allocation2 + $0x8] sm:$0xf]
    %v143 = vld [vmem:[#allocation2 + $0xc] sm:$0xf]
    %v144 = vld [vmem:[#allocation2 + $0x10] sm:$0xf]
    %v145 = vld [vmem:[#allocation2 + $0x14] sm:$0xf]
    %v146 = vld [vmem:[#allocation2 + $0x18] sm:$0xf]
    %v147 = vld [vmem:[#allocation2 + $0x1c] sm:$0xf]
    %v148 = vld [vmem:[#allocation2 + $0x20] sm:$0xf]
    %v149 = vld [vmem:[#allocation2 + $0x24] sm:$0xf]
    %v150 = vld [vmem:[#allocation2 + $0x28] sm:$0xf]
    %v151 = vld [vmem:[#allocation2 + $0x2c] sm:$0xf]
    %v152 = vld [vmem:[#allocation2 + $0x30] sm:$0xf]
    %v153 = vld [vmem:[#allocation2 + $0x34] sm:$0xf]
    %v154 = vld [vmem:[#allocation2 + $0x38] sm:$0xf]
    %v155 = vld [vmem:[#allocation2 + $0x3c] sm:$0xf]
    %v156 = vld [vmem:[#allocation2 + $0x40] sm:$0xf]
    %v157 = vld [vmem:[#allocation2 + $0x44] sm:$0xf]
    %v158 = vld [vmem:[#allocation2 + $0x48] sm:$0xf]
    %v159 = vld [vmem:[#allocation2 + $0x4c] sm:$0xf]
    %v160 = vld [vmem:[#allocation2 + $0x50] sm:$0xf]
    %v161 = vld [vmem:[#allocation2 + $0x54] sm:$0xf]
    %v162 = vld [vmem:[#allocation2 + $0x58] sm:$0xf]
    %v163 = vld [vmem:[#allocation2 + $0x5c] sm:$0xf]
    %v164 = vld [vmem:[#allocation2 + $0x60] sm:$0xf]
    %v165 = vld [vmem:[#allocation2 + $0x64] sm:$0xf]
    %v166 = vld [vmem:[#allocation2 + $0x68] sm:$0xf]
    %v167 = vld [vmem:[#allocation2 + $0x6c] sm:$0xf]
    %v168 = vld [vmem:[#allocation2 + $0x70] sm:$0xf]
    %v169 = vld [vmem:[#allocation2 + $0x74] sm:$0xf]
    %v170 = vld [vmem:[#allocation2 + $0x78] sm:$0xf]
    %v171 = vld [vmem:[#allocation2 + $0x7c] sm:$0xf]
    %v172 = vld [vmem:[#allocation2 + $0x80] sm:$0xf]
    %v173 = vld [vmem:[#allocation2 + $0x84] sm:$0xf]
    %v174 = vld [vmem:[#allocation2 + $0x88] sm:$0xf]
    %v175 = vld [vmem:[#allocation2 + $0x8c] sm:$0xf]
    %v176 = vld [vmem:[#allocation2 + $0x90] sm:$0xf]
    %v177 = vld [vmem:[#allocation2 + $0x94] sm:$0xf]
    %v178 = vld [vmem:[#allocation2 + $0x98] sm:$0xf]
    %v179 = vld [vmem:[#allocation2 + $0x9c] sm:$0xf]
    %v180 = vld [vmem:[#allocation2 + $0xa0] sm:$0xf]
    %v181 = vld [vmem:[#allocation2 + $0xa4] sm:$0xf]
    %v182 = vld [vmem:[#allocation2 + $0xa8] sm:$0xf]
    %v183 = vld [vmem:[#allocation2 + $0xac] sm:$0xf]
    %v184 = vld [vmem:[#allocation2 + $0xb0] sm:$0xf]
    %v185 = vld [vmem:[#allocation2 + $0xb4] sm:$0xf]
    %v186 = vld [vmem:[#allocation2 + $0xb8] sm:$0xf]
    %v187 = vld [vmem:[#allocation2 + $0xbc] sm:$0xf]
    %v188 = vld [vmem:[%s2] sm:$0x1]
    %v190 = vlaneseq
    %v191 = vshrl.u32 %v190, 7
    %v192 = vsub.s32 0, %v191
    %v193 = vrot.slane %v188, %v192
    %v243 = vunpack.c.l.b16 %v140
    %v244 = vunpack.c.l.b16 %v141
    %v245 = vunpack.c.l.b16 %v142
    %v246 = vunpack.c.l.b16 %v143
    %v247 = vunpack.c.l.b16 %v144
    %v248 = vunpack.c.l.b16 %v145
    %v249 = vunpack.c.l.b16 %v146
    %v250 = vunpack.c.l.b16 %v147
    %v251 = vunpack.c.l.b16 %v148
    %v252 = vunpack.c.l.b16 %v149
    %v253 = vunpack.c.l.b16 %v150
    %v254 = vunpack.c.l.b16 %v151
    %v255 = vunpack.c.l.b16 %v152
    %v256 = vunpack.c.l.b16 %v153
    %v257 = vunpack.c.l.b16 %v154
    %v258 = vunpack.c.l.b16 %v155
    %v259 = vunpack.c.l.b16 %v156
    %v260 = vunpack.c.l.b16 %v157
    %v261 = vunpack.c.l.b16 %v158
    %v262 = vunpack.c.l.b16 %v159
    %v263 = vunpack.c.l.b16 %v160
    %v264 = vunpack.c.l.b16 %v161
    %v265 = vunpack.c.l.b16 %v162
    %v266 = vunpack.c.l.b16 %v163
    %v267 = vunpack.c.l.b16 %v164
    %v268 = vunpack.c.l.b16 %v165
    %v269 = vunpack.c.l.b16 %v166
    %v270 = vunpack.c.l.b16 %v167
    %v271 = vunpack.c.l.b16 %v168
    %v272 = vunpack.c.l.b16 %v169
    %v273 = vunpack.c.l.b16 %v170
    %v274 = vunpack.c.l.b16 %v171
    %v275 = vunpack.c.l.b16 %v172
    %v276 = vunpack.c.l.b16 %v173
    %v277 = vunpack.c.l.b16 %v174
    %v278 = vunpack.c.l.b16 %v175
    %v279 = vunpack.c.l.b16 %v176
    %v280 = vunpack.c.l.b16 %v177
    %v281 = vunpack.c.l.b16 %v178
    %v282 = vunpack.c.l.b16 %v179
    %v283 = vunpack.c.l.b16 %v180
    %v284 = vunpack.c.l.b16 %v181
    %v285 = vunpack.c.l.b16 %v182
    %v286 = vunpack.c.l.b16 %v183
    %v287 = vunpack.c.l.b16 %v184
    %v288 = vunpack.c.l.b16 %v185
    %v289 = vunpack.c.l.b16 %v186
    %v290 = vunpack.c.l.b16 %v187
    %v291 = vpack.c.b16 %v244, %v243
    %v292 = vpack.c.b16 %v246, %v245
    %v293 = vpack.c.b16 %v248, %v247
    %v294 = vpack.c.b16 %v250, %v249
    %v295 = vpack.c.b16 %v252, %v251
    %v296 = vpack.c.b16 %v254, %v253
    %v297 = vpack.c.b16 %v256, %v255
    %v298 = vpack.c.b16 %v258, %v257
    %v299 = vpack.c.b16 %v260, %v259
    %v300 = vpack.c.b16 %v262, %v261
    %v301 = vpack.c.b16 %v264, %v263
    %v302 = vpack.c.b16 %v266, %v265
    %v303 = vpack.c.b16 %v268, %v267
    %v304 = vpack.c.b16 %v270, %v269
    %v305 = vpack.c.b16 %v272, %v271
    %v306 = vpack.c.b16 %v274, %v273
    %v307 = vpack.c.b16 %v276, %v275
    %v308 = vpack.c.b16 %v278, %v277
    %v309 = vpack.c.b16 %v280, %v279
    %v310 = vpack.c.b16 %v282, %v281
    %v311 = vpack.c.b16 %v284, %v283
    %v312 = vpack.c.b16 %v286, %v285
    %v313 = vpack.c.b16 %v288, %v287
    %v314 = vpack.c.b16 %v290, %v289
    %339 = vmatprep.subr.bf16.mxu0 0
    %340 = vmatpush1.bf16.msra.mxu0 %v298
    %341 = vmatprep.subr.bf16.mxu0 0
    %342 = vmatpush1.bf16.msra.mxu0 %v297
    %343 = vmatprep.subr.bf16.mxu0 0
    %344 = vmatpush1.bf16.msra.mxu0 %v296
    %345 = vmatprep.subr.bf16.mxu0 0
    %346 = vmatpush1.bf16.msra.mxu0 %v295
    %347 = vmatprep.subr.bf16.mxu0 0
    %348 = vmatpush1.bf16.msra.mxu0 %v294
    %349 = vmatprep.subr.bf16.mxu0 0
    %350 = vmatpush1.bf16.msra.mxu0 %v293
    %351 = vmatprep.subr.bf16.mxu0 0
    %352 = vmatpush1.bf16.msra.mxu0 %v292
    %353 = vmatprep.subr.bf16.mxu0 0
    %354 = vmatpush1.bf16.msra.mxu0 %v291
    %355 = vmatprep.subr.bf16.mxu0 0
    %356 = vmatpush2.bf16.msra.mxu0 %v306
    %357 = vmatprep.subr.bf16.mxu0 0
    %358 = vmatpush2.bf16.msra.mxu0 %v305
    %359 = vmatprep.subr.bf16.mxu0 0
    %360 = vmatpush2.bf16.msra.mxu0 %v304
    %361 = vmatprep.subr.bf16.mxu0 0
    %362 = vmatpush2.bf16.msra.mxu0 %v303
    %363 = vmatprep.subr.bf16.mxu0 0
    %364 = vmatpush2.bf16.msra.mxu0 %v302
    %365 = vmatprep.subr.bf16.mxu0 0
    %366 = vmatpush2.bf16.msra.mxu0 %v301
    %367 = vmatprep.subr.bf16.mxu0 0
    %368 = vmatpush2.bf16.msra.mxu0 %v300
    %369 = vmatprep.subr.bf16.mxu0 0
    %370 = vmatpush2.bf16.msra.mxu0 %v299
    %371 = vmatprep.mubr.bf16.mxu0 %v135
    %372 = vmatmul.mubr.bf16.gmra.mxu0 %v134
    %v373 = vpop.f32.mrf.mxu0
    %v374 = vadd.f32 %v193, %v373
    %v375 = vpop.f32.mrf.mxu0
    %v376 = vpop.f32.mrf.mxu0
    %v377 = vadd.f32 %v193, %v376
    %v378 = vpop.f32.mrf.mxu0
    %379 = vmatprep.mubr.bf16.mxu0 %v138
    %380 = vmatmul.mubr.bf16.gmra.mxu0 %v137
    %v381 = vpop.f32.mrf.mxu0
    %v382 = vadd.f32 %v193, %v381
    %v383 = vpop.f32.mrf.mxu0
    %v384 = vpop.f32.mrf.mxu0
    %v385 = vadd.f32 %v193, %v384
    %v386 = vpop.f32.mrf.mxu0
    %387 = vdwg.mxu0
    %388 = vmatprep.subr.bf16.mxu0 0
    %389 = vmatpush1.bf16.msra.mxu0 %v314
    %390 = vmatprep.subr.bf16.mxu0 0
    %391 = vmatpush1.bf16.msra.mxu0 %v313
    %392 = vmatprep.subr.bf16.mxu0 0
    %393 = vmatpush1.bf16.msra.mxu0 %v312
    %394 = vmatprep.subr.bf16.mxu0 0
    %395 = vmatpush1.bf16.msra.mxu0 %v311
    %396 = vmatprep.subr.bf16.mxu0 0
    %397 = vmatpush1.bf16.msra.mxu0 %v310
    %398 = vmatprep.subr.bf16.mxu0 0
    %399 = vmatpush1.bf16.msra.mxu0 %v309
    %400 = vmatprep.subr.bf16.mxu0 0
    %401 = vmatpush1.bf16.msra.mxu0 %v308
    %402 = vmatprep.subr.bf16.mxu0 0
    %403 = vmatpush1.bf16.msra.mxu0 %v307
    %404 = vmatprep.subr.bf16.mxu0 0
    %405 = vmatpush2.bf16.msra.mxu0 0
    %406 = vmatprep.subr.bf16.mxu0 0
    %407 = vmatpush2.bf16.msra.mxu0 0
    %408 = vmatprep.subr.bf16.mxu0 0
    %409 = vmatpush2.bf16.msra.mxu0 0
    %410 = vmatprep.subr.bf16.mxu0 0
    %411 = vmatpush2.bf16.msra.mxu0 0
    %412 = vmatprep.subr.bf16.mxu0 0
    %413 = vmatpush2.bf16.msra.mxu0 0
    %414 = vmatprep.subr.bf16.mxu0 0
    %415 = vmatpush2.bf16.msra.mxu0 0
    %416 = vmatprep.subr.bf16.mxu0 0
    %417 = vmatpush2.bf16.msra.mxu0 0
    %418 = vmatprep.subr.bf16.mxu0 0
    %419 = vmatpush2.bf16.msra.mxu0 0
    %420 = vmatprep.mubr.bf16.mxu0 0
    %421 = vmatmul.mubr.bf16.gmra.mxu0 %v136
    %v422 = vpop.f32.mrf.mxu0
    %v423 = vadd.f32 %v374, %v422
    %v424 = vpop.f32.mrf.mxu0
    %v425 = vpop.f32.mrf.mxu0
    %v426 = vadd.f32 %v377, %v425
    %v427 = vpop.f32.mrf.mxu0
    %428 = vmatprep.mubr.bf16.mxu0 0
    %429 = vmatmul.mubr.bf16.gmra.mxu0 %v139
    %v430 = vpop.f32.mrf.mxu0
    %v431 = vadd.f32 %v382, %v430
    %v432 = vpop.f32.mrf.mxu0
    %v433 = vpop.f32.mrf.mxu0
    %v434 = vadd.f32 %v385, %v433
    %v435 = vpop.f32.mrf.mxu0
    %436 = vdwg.mxu0
    %v437 = vmax.f32 %v423, 0.0
    %v438 = vmax.f32 %v426, 0.0
    %v439 = vmax.f32 %v431, 0.0
    %v440 = vmax.f32 %v434, 0.0
    %v441 = vrot.slane %v437, 7
    %v442 = vrot.slane %v438, 7
    %v443 = vrot.slane %v439, 7
    %v444 = vrot.slane %v440, 7
    %v445 = vsel %vm72, %v443, %v444
    %v446 = vsel %vm72, %v442, %v443
    %v447 = vsel %vm72, %v441, %v442
    %v448 = vsel %vm72, %v444, %v441
    %v449 = vmul.f32 %v448, %v80
    %v450 = vmul.f32 %v447, %v85
    %v451 = vmul.f32 %v446, %v90
    %v452 = vmul.f32 %v445, %v95
    %v453 = vrot.slane %v437, 1
    %v454 = vrot.slane %v438, 1
    %v455 = vrot.slane %v439, 1
    %v456 = vrot.slane %v440, 1
    %v457 = vsel %vm105, %v455, %v456
    %v458 = vsel %vm105, %v454, %v455
    %v459 = vsel %vm105, %v453, %v454
    %v460 = vsel %vm105, %v456, %v453
    %v461 = vmul.f32 %v459, %v113
    %v462 = vmul.f32 %v458, %v118
    %v463 = vmul.f32 %v457, %v123
    %v464 = vmul.f32 %v460, %v128
    %v465 = vpack.c.bf16 %v450, %v449
    %v466 = vpack.c.bf16 %v438, %v437
    %v467 = vpack.c.bf16 %v462, %v461
    %v468 = vpack.c.bf16 %v452, %v451
    %v469 = vpack.c.bf16 %v440, %v439
    %v470 = vpack.c.bf16 %v464, %v463
    %s471 = scalar_lea.vmem [#allocation2], 192
    %v472 = vld [vmem:[%s471] sm:$0xf]
    %v473 = vld [vmem:[%s471 + $0x4] sm:$0xf]
    %v474 = vld [vmem:[%s471 + $0x8] sm:$0xf]
    %v475 = vld [vmem:[%s471 + $0xc] sm:$0xf]
    %v476 = vld [vmem:[%s471 + $0x10] sm:$0xf]
    %v477 = vld [vmem:[%s471 + $0x14] sm:$0xf]
    %v478 = vld [vmem:[%s471 + $0x18] sm:$0xf]
    %v479 = vld [vmem:[%s471 + $0x1c] sm:$0xf]
    %v480 = vld [vmem:[%s471 + $0x20] sm:$0xf]
    %v481 = vld [vmem:[%s471 + $0x24] sm:$0xf]
    %v482 = vld [vmem:[%s471 + $0x28] sm:$0xf]
    %v483 = vld [vmem:[%s471 + $0x2c] sm:$0xf]
    %v484 = vld [vmem:[%s471 + $0x30] sm:$0xf]
    %v485 = vld [vmem:[%s471 + $0x34] sm:$0xf]
    %v486 = vld [vmem:[%s471 + $0x38] sm:$0xf]
    %v487 = vld [vmem:[%s471 + $0x3c] sm:$0xf]
    %v488 = vld [vmem:[%s471 + $0x40] sm:$0xf]
    %v489 = vld [vmem:[%s471 + $0x44] sm:$0xf]
    %v490 = vld [vmem:[%s471 + $0x48] sm:$0xf]
    %v491 = vld [vmem:[%s471 + $0x4c] sm:$0xf]
    %v492 = vld [vmem:[%s471 + $0x50] sm:$0xf]
    %v493 = vld [vmem:[%s471 + $0x54] sm:$0xf]
    %v494 = vld [vmem:[%s471 + $0x58] sm:$0xf]
    %v495 = vld [vmem:[%s471 + $0x5c] sm:$0xf]
    %v496 = vld [vmem:[%s471 + $0x60] sm:$0xf]
    %v497 = vld [vmem:[%s471 + $0x64] sm:$0xf]
    %v498 = vld [vmem:[%s471 + $0x68] sm:$0xf]
    %v499 = vld [vmem:[%s471 + $0x6c] sm:$0xf]
    %v500 = vld [vmem:[%s471 + $0x70] sm:$0xf]
    %v501 = vld [vmem:[%s471 + $0x74] sm:$0xf]
    %v502 = vld [vmem:[%s471 + $0x78] sm:$0xf]
    %v503 = vld [vmem:[%s471 + $0x7c] sm:$0xf]
    %v504 = vld [vmem:[%s471 + $0x80] sm:$0xf]
    %v505 = vld [vmem:[%s471 + $0x84] sm:$0xf]
    %v506 = vld [vmem:[%s471 + $0x88] sm:$0xf]
    %v507 = vld [vmem:[%s471 + $0x8c] sm:$0xf]
    %v508 = vld [vmem:[%s471 + $0x90] sm:$0xf]
    %v509 = vld [vmem:[%s471 + $0x94] sm:$0xf]
    %v510 = vld [vmem:[%s471 + $0x98] sm:$0xf]
    %v511 = vld [vmem:[%s471 + $0x9c] sm:$0xf]
    %v512 = vld [vmem:[%s471 + $0xa0] sm:$0xf]
    %v513 = vld [vmem:[%s471 + $0xa4] sm:$0xf]
    %v514 = vld [vmem:[%s471 + $0xa8] sm:$0xf]
    %v515 = vld [vmem:[%s471 + $0xac] sm:$0xf]
    %v516 = vld [vmem:[%s471 + $0xb0] sm:$0xf]
    %v517 = vld [vmem:[%s471 + $0xb4] sm:$0xf]
    %v518 = vld [vmem:[%s471 + $0xb8] sm:$0xf]
    %v519 = vld [vmem:[%s471 + $0xbc] sm:$0xf]
    %s520 = scalar_lea.vmem %s2, 1
    %v521 = vld [vmem:[%s520] sm:$0x1]
    %v523 = vlaneseq
    %v524 = vshrl.u32 %v523, 7
    %v525 = vsub.s32 0, %v524
    %v526 = vrot.slane %v521, %v525
    %v576 = vunpack.c.l.b16 %v472
    %v577 = vunpack.c.l.b16 %v473
    %v578 = vunpack.c.l.b16 %v474
    %v579 = vunpack.c.l.b16 %v475
    %v580 = vunpack.c.l.b16 %v476
    %v581 = vunpack.c.l.b16 %v477
    %v582 = vunpack.c.l.b16 %v478
    %v583 = vunpack.c.l.b16 %v479
    %v584 = vunpack.c.l.b16 %v480
    %v585 = vunpack.c.l.b16 %v481
    %v586 = vunpack.c.l.b16 %v482
    %v587 = vunpack.c.l.b16 %v483
    %v588 = vunpack.c.l.b16 %v484
    %v589 = vunpack.c.l.b16 %v485
    %v590 = vunpack.c.l.b16 %v486
    %v591 = vunpack.c.l.b16 %v487
    %v592 = vunpack.c.l.b16 %v488
    %v593 = vunpack.c.l.b16 %v489
    %v594 = vunpack.c.l.b16 %v490
    %v595 = vunpack.c.l.b16 %v491
    %v596 = vunpack.c.l.b16 %v492
    %v597 = vunpack.c.l.b16 %v493
    %v598 = vunpack.c.l.b16 %v494
    %v599 = vunpack.c.l.b16 %v495
    %v600 = vunpack.c.l.b16 %v496
    %v601 = vunpack.c.l.b16 %v497
    %v602 = vunpack.c.l.b16 %v498
    %v603 = vunpack.c.l.b16 %v499
    %v604 = vunpack.c.l.b16 %v500
    %v605 = vunpack.c.l.b16 %v501
    %v606 = vunpack.c.l.b16 %v502
    %v607 = vunpack.c.l.b16 %v503
    %v608 = vunpack.c.l.b16 %v504
    %v609 = vunpack.c.l.b16 %v505
    %v610 = vunpack.c.l.b16 %v506
    %v611 = vunpack.c.l.b16 %v507
    %v612 = vunpack.c.l.b16 %v508
    %v613 = vunpack.c.l.b16 %v509
    %v614 = vunpack.c.l.b16 %v510
    %v615 = vunpack.c.l.b16 %v511
    %v616 = vunpack.c.l.b16 %v512
    %v617 = vunpack.c.l.b16 %v513
    %v618 = vunpack.c.l.b16 %v514
    %v619 = vunpack.c.l.b16 %v515
    %v620 = vunpack.c.l.b16 %v516
    %v621 = vunpack.c.l.b16 %v517
    %v622 = vunpack.c.l.b16 %v518
    %v623 = vunpack.c.l.b16 %v519
    %v624 = vpack.c.b16 %v577, %v576
    %v625 = vpack.c.b16 %v579, %v578
    %v626 = vpack.c.b16 %v581, %v580
    %v627 = vpack.c.b16 %v583, %v582
    %v628 = vpack.c.b16 %v585, %v584
    %v629 = vpack.c.b16 %v587, %v586
    %v630 = vpack.c.b16 %v589, %v588
    %v631 = vpack.c.b16 %v591, %v590
    %v632 = vpack.c.b16 %v593, %v592
    %v633 = vpack.c.b16 %v595, %v594
    %v634 = vpack.c.b16 %v597, %v596
    %v635 = vpack.c.b16 %v599, %v598
    %v636 = vpack.c.b16 %v601, %v600
    %v637 = vpack.c.b16 %v603, %v602
    %v638 = vpack.c.b16 %v605, %v604
    %v639 = vpack.c.b16 %v607, %v606
    %v640 = vpack.c.b16 %v609, %v608
    %v641 = vpack.c.b16 %v611, %v610
    %v642 = vpack.c.b16 %v613, %v612
    %v643 = vpack.c.b16 %v615, %v614
    %v644 = vpack.c.b16 %v617, %v616
    %v645 = vpack.c.b16 %v619, %v618
    %v646 = vpack.c.b16 %v621, %v620
    %v647 = vpack.c.b16 %v623, %v622
    %672 = vmatprep.subr.bf16.mxu0 0
    %673 = vmatpush1.bf16.msra.mxu0 %v631
    %674 = vmatprep.subr.bf16.mxu0 0
    %675 = vmatpush1.bf16.msra.mxu0 %v630
    %676 = vmatprep.subr.bf16.mxu0 0
    %677 = vmatpush1.bf16.msra.mxu0 %v629
    %678 = vmatprep.subr.bf16.mxu0 0
    %679 = vmatpush1.bf16.msra.mxu0 %v628
    %680 = vmatprep.subr.bf16.mxu0 0
    %681 = vmatpush1.bf16.msra.mxu0 %v627
    %682 = vmatprep.subr.bf16.mxu0 0
    %683 = vmatpush1.bf16.msra.mxu0 %v626
    %684 = vmatprep.subr.bf16.mxu0 0
    %685 = vmatpush1.bf16.msra.mxu0 %v625
    %686 = vmatprep.subr.bf16.mxu0 0
    %687 = vmatpush1.bf16.msra.mxu0 %v624
    %688 = vmatprep.subr.bf16.mxu0 0
    %689 = vmatpush2.bf16.msra.mxu0 %v639
    %690 = vmatprep.subr.bf16.mxu0 0
    %691 = vmatpush2.bf16.msra.mxu0 %v638
    %692 = vmatprep.subr.bf16.mxu0 0
    %693 = vmatpush2.bf16.msra.mxu0 %v637
    %694 = vmatprep.subr.bf16.mxu0 0
    %695 = vmatpush2.bf16.msra.mxu0 %v636
    %696 = vmatprep.subr.bf16.mxu0 0
    %697 = vmatpush2.bf16.msra.mxu0 %v635
    %698 = vmatprep.subr.bf16.mxu0 0
    %699 = vmatpush2.bf16.msra.mxu0 %v634
    %700 = vmatprep.subr.bf16.mxu0 0
    %701 = vmatpush2.bf16.msra.mxu0 %v633
    %702 = vmatprep.subr.bf16.mxu0 0
    %703 = vmatpush2.bf16.msra.mxu0 %v632
    %704 = vmatprep.mubr.bf16.mxu0 %v466
    %705 = vmatmul.mubr.bf16.gmra.mxu0 %v465
    %v706 = vpop.f32.mrf.mxu0
    %v707 = vadd.f32 %v526, %v706
    %v708 = vpop.f32.mrf.mxu0
    %v709 = vpop.f32.mrf.mxu0
    %v710 = vadd.f32 %v526, %v709
    %v711 = vpop.f32.mrf.mxu0
    %712 = vmatprep.mubr.bf16.mxu0 %v469
    %713 = vmatmul.mubr.bf16.gmra.mxu0 %v468
    %v714 = vpop.f32.mrf.mxu0
    %v715 = vadd.f32 %v526, %v714
    %v716 = vpop.f32.mrf.mxu0
    %v717 = vpop.f32.mrf.mxu0
    %v718 = vadd.f32 %v526, %v717
    %v719 = vpop.f32.mrf.mxu0
    %720 = vdwg.mxu0
    %721 = vmatprep.subr.bf16.mxu0 0
    %722 = vmatpush1.bf16.msra.mxu0 %v647
    %723 = vmatprep.subr.bf16.mxu0 0
    %724 = vmatpush1.bf16.msra.mxu0 %v646
    %725 = vmatprep.subr.bf16.mxu0 0
    %726 = vmatpush1.bf16.msra.mxu0 %v645
    %727 = vmatprep.subr.bf16.mxu0 0
    %728 = vmatpush1.bf16.msra.mxu0 %v644
    %729 = vmatprep.subr.bf16.mxu0 0
    %730 = vmatpush1.bf16.msra.mxu0 %v643
    %731 = vmatprep.subr.bf16.mxu0 0
    %732 = vmatpush1.bf16.msra.mxu0 %v642
    %733 = vmatprep.subr.bf16.mxu0 0
    %734 = vmatpush1.bf16.msra.mxu0 %v641
    %735 = vmatprep.subr.bf16.mxu0 0
    %736 = vmatpush1.bf16.msra.mxu0 %v640
    %737 = vmatprep.subr.bf16.mxu0 0
    %738 = vmatpush2.bf16.msra.mxu0 0
    %739 = vmatprep.subr.bf16.mxu0 0
    %740 = vmatpush2.bf16.msra.mxu0 0
    %741 = vmatprep.subr.bf16.mxu0 0
    %742 = vmatpush2.bf16.msra.mxu0 0
    %743 = vmatprep.subr.bf16.mxu0 0
    %744 = vmatpush2.bf16.msra.mxu0 0
    %745 = vmatprep.subr.bf16.mxu0 0
    %746 = vmatpush2.bf16.msra.mxu0 0
    %747 = vmatprep.subr.bf16.mxu0 0
    %748 = vmatpush2.bf16.msra.mxu0 0
    %749 = vmatprep.subr.bf16.mxu0 0
    %750 = vmatpush2.bf16.msra.mxu0 0
    %751 = vmatprep.subr.bf16.mxu0 0
    %752 = vmatpush2.bf16.msra.mxu0 0
    %753 = vmatprep.mubr.bf16.mxu0 0
    %754 = vmatmul.mubr.bf16.gmra.mxu0 %v467
    %v755 = vpop.f32.mrf.mxu0
    %v756 = vadd.f32 %v707, %v755
    %v757 = vpop.f32.mrf.mxu0
    %v758 = vpop.f32.mrf.mxu0
    %v759 = vadd.f32 %v710, %v758
    %v760 = vpop.f32.mrf.mxu0
    %761 = vmatprep.mubr.bf16.mxu0 0
    %762 = vmatmul.mubr.bf16.gmra.mxu0 %v470
    %v763 = vpop.f32.mrf.mxu0
    %v764 = vadd.f32 %v715, %v763
    %v765 = vpop.f32.mrf.mxu0
    %v766 = vpop.f32.mrf.mxu0
    %v767 = vadd.f32 %v718, %v766
    %v768 = vpop.f32.mrf.mxu0
    %769 = vdwg.mxu0
    %v770 = vld [vmem:[%s7] sm:$0x3]
    %vm771 = vcmask 261120
    %v773 = vsel %vm771, %v770, 0
    %775 = vmatprep.subr.mxu0 0.0
    %776 = vmatpush1.msra.mxu0 0.0
    %777 = vmatprep.subr.mxu0 0.0
    %778 = vmatpush1.msra.mxu0 0.0
    %779 = vmatprep.subr.mxu0 0.0
    %780 = vmatpush1.msra.mxu0 0.0
    %781 = vmatprep.subr.mxu0 0.0
    %782 = vmatpush1.msra.mxu0 0.0
    %783 = vmatprep.subr.mxu0 0.0
    %784 = vmatpush1.msra.mxu0 0.0
    %785 = vmatprep.subr.mxu0 0.0
    %786 = vmatpush1.msra.mxu0 0.0
    %787 = vmatprep.subr.mxu0 0.0
    %788 = vmatpush1.msra.mxu0 0.0
    %789 = vmatprep.subr.mxu0 0.0
    %790 = vmatpush1.msra.mxu0 0.0
    %791 = vmatprep.subr.mxu0 0.0
    %792 = vmatpush1.msra.mxu0 0.0
    %793 = vmatprep.subr.mxu0 0.0
    %794 = vmatpush1.msra.mxu0 0.0
    %795 = vmatprep.subr.mxu0 0.0
    %796 = vmatpush1.msra.mxu0 0.0
    %797 = vmatprep.subr.mxu0 0.0
    %798 = vmatpush1.msra.mxu0 0.0
    %799 = vmatprep.subr.mxu0 0.0
    %800 = vmatpush1.msra.mxu0 %v767
    %801 = vmatprep.subr.mxu0 0.0
    %802 = vmatpush1.msra.mxu0 %v764
    %803 = vmatprep.subr.mxu0 0.0
    %804 = vmatpush1.msra.mxu0 %v759
    %805 = vmatprep.subr.mxu0 0.0
    %806 = vmatpush1.msra.mxu0 %v756
    %807 = vmatprep.subr.mxu0 0.0
    %808 = vmatpush2.msra.mxu0 0.0
    %809 = vmatprep.subr.mxu0 0.0
    %810 = vmatpush2.msra.mxu0 0.0
    %811 = vmatprep.subr.mxu0 0.0
    %812 = vmatpush2.msra.mxu0 0.0
    %813 = vmatprep.subr.mxu0 0.0
    %814 = vmatpush2.msra.mxu0 0.0
    %815 = vmatprep.subr.mxu0 0.0
    %816 = vmatpush2.msra.mxu0 0.0
    %817 = vmatprep.subr.mxu0 0.0
    %818 = vmatpush2.msra.mxu0 0.0
    %819 = vmatprep.subr.mxu0 0.0
    %820 = vmatpush2.msra.mxu0 0.0
    %821 = vmatprep.subr.mxu0 0.0
    %822 = vmatpush2.msra.mxu0 0.0
    %823 = vmatprep.subr.mxu0 0.0
    %824 = vmatpush2.msra.mxu0 0.0
    %825 = vmatprep.subr.mxu0 0.0
    %826 = vmatpush2.msra.mxu0 0.0
    %827 = vmatprep.subr.mxu0 0.0
    %828 = vmatpush2.msra.mxu0 0.0
    %829 = vmatprep.subr.mxu0 0.0
    %830 = vmatpush2.msra.mxu0 0.0
    %831 = vmatprep.subr.mxu0 0.0
    %832 = vmatpush2.msra.mxu0 0.0
    %833 = vmatprep.subr.mxu0 0.0
    %834 = vmatpush2.msra.mxu0 0.0
    %835 = vmatprep.subr.mxu0 0.0
    %836 = vmatpush2.msra.mxu0 0.0
    %837 = vmatprep.subr.mxu0 0.0
    %838 = vmatpush2.msra.mxu0 0.0
    %839 = vmatprep.mubr.f32.mxu0 0.0
    %840 = vmatmul.mubr.f32.gmra.mxu0 %v773
    %v841 = vpop.f32.mrf.mxu0
    %v842 = vadd.f32 0.0, %v841
    %v843 = vpop.f32.mrf.mxu0
    %844 = vdwg.mxu0
    %v845 = vld [vmem:[%s3] sm:$0xff]
    %v846 = vld [vmem:[%s3 + $0x8] sm:$0xff]
    %v847 = vld [vmem:[%s3 + $0x10] sm:$0xff]
    %v848 = vld [vmem:[%s3 + $0x18] sm:$0xff]
    %v849 = vld [vmem:[%s3 + $0x20] sm:$0xff]
    %v850 = vld [vmem:[%s3 + $0x28] sm:$0xff]
    %v851 = vld [vmem:[%s3 + $0x30] sm:$0xff]
    %v852 = vld [vmem:[%s3 + $0x38] sm:$0xff]
    %v853 = vld [vmem:[%s3 + $0x40] sm:$0xff]
    %v854 = vld [vmem:[%s3 + $0x48] sm:$0xff]
    %v855 = vld [vmem:[%s3 + $0x50] sm:$0xff]
    %v856 = vld [vmem:[%s3 + $0x58] sm:$0xff]
    %v857 = vld [vmem:[%s3 + $0x60] sm:$0xff]
    %v858 = vld [vmem:[%s3 + $0x68] sm:$0xff]
    %v859 = vld [vmem:[%s3 + $0x70] sm:$0xff]
    %v860 = vld [vmem:[%s3 + $0x78] sm:$0xff]
    %v861 = vld [vmem:[%s4] sm:$0x1]
    %v863 = vlaneseq
    %v864 = vshrl.u32 %v863, 7
    %v865 = vsub.s32 0, %v864
    %v866 = vrot.slane %v861, %v865
    %868 = vmatprep.subr.mxu0 0.0
    %869 = vmatpush1.msra.mxu0 %v860
    %870 = vmatprep.subr.mxu0 0.0
    %871 = vmatpush1.msra.mxu0 %v859
    %872 = vmatprep.subr.mxu0 0.0
    %873 = vmatpush1.msra.mxu0 %v858
    %874 = vmatprep.subr.mxu0 0.0
    %875 = vmatpush1.msra.mxu0 %v857
    %876 = vmatprep.subr.mxu0 0.0
    %877 = vmatpush1.msra.mxu0 %v856
    %878 = vmatprep.subr.mxu0 0.0
    %879 = vmatpush1.msra.mxu0 %v855
    %880 = vmatprep.subr.mxu0 0.0
    %881 = vmatpush1.msra.mxu0 %v854
    %882 = vmatprep.subr.mxu0 0.0
    %883 = vmatpush1.msra.mxu0 %v853
    %884 = vmatprep.subr.mxu0 0.0
    %885 = vmatpush1.msra.mxu0 %v852
    %886 = vmatprep.subr.mxu0 0.0
    %887 = vmatpush1.msra.mxu0 %v851
    %888 = vmatprep.subr.mxu0 0.0
    %889 = vmatpush1.msra.mxu0 %v850
    %890 = vmatprep.subr.mxu0 0.0
    %891 = vmatpush1.msra.mxu0 %v849
    %892 = vmatprep.subr.mxu0 0.0
    %893 = vmatpush1.msra.mxu0 %v848
    %894 = vmatprep.subr.mxu0 0.0
    %895 = vmatpush1.msra.mxu0 %v847
    %896 = vmatprep.subr.mxu0 0.0
    %897 = vmatpush1.msra.mxu0 %v846
    %898 = vmatprep.subr.mxu0 0.0
    %899 = vmatpush1.msra.mxu0 %v845
    %900 = vmatprep.subr.mxu0 0.0
    %901 = vmatpush2.msra.mxu0 0.0
    %902 = vmatprep.subr.mxu0 0.0
    %903 = vmatpush2.msra.mxu0 0.0
    %904 = vmatprep.subr.mxu0 0.0
    %905 = vmatpush2.msra.mxu0 0.0
    %906 = vmatprep.subr.mxu0 0.0
    %907 = vmatpush2.msra.mxu0 0.0
    %908 = vmatprep.subr.mxu0 0.0
    %909 = vmatpush2.msra.mxu0 0.0
    %910 = vmatprep.subr.mxu0 0.0
    %911 = vmatpush2.msra.mxu0 0.0
    %912 = vmatprep.subr.mxu0 0.0
    %913 = vmatpush2.msra.mxu0 0.0
    %914 = vmatprep.subr.mxu0 0.0
    %915 = vmatpush2.msra.mxu0 0.0
    %916 = vmatprep.subr.mxu0 0.0
    %917 = vmatpush2.msra.mxu0 0.0
    %918 = vmatprep.subr.mxu0 0.0
    %919 = vmatpush2.msra.mxu0 0.0
    %920 = vmatprep.subr.mxu0 0.0
    %921 = vmatpush2.msra.mxu0 0.0
    %922 = vmatprep.subr.mxu0 0.0
    %923 = vmatpush2.msra.mxu0 0.0
    %924 = vmatprep.subr.mxu0 0.0
    %925 = vmatpush2.msra.mxu0 0.0
    %926 = vmatprep.subr.mxu0 0.0
    %927 = vmatpush2.msra.mxu0 0.0
    %928 = vmatprep.subr.mxu0 0.0
    %929 = vmatpush2.msra.mxu0 0.0
    %930 = vmatprep.subr.mxu0 0.0
    %931 = vmatpush2.msra.mxu0 0.0
    %932 = vmatprep.mubr.f32.mxu0 0.0
    %933 = vmatmul.mubr.f32.gmra.mxu0 %v842
    %v934 = vpop.f32.mrf.mxu0
    %v935 = vadd.f32 %v866, %v934
    %v936 = vpop.f32.mrf.mxu0
    %937 = vdwg.mxu0
    %v938 = vmax.f32 %v935, 0.0
    %v939 = vld [vmem:[%s5] sm:$0x3]
    %v940 = vld [vmem:[%s6] sm:$0x1]
    %v942 = vlaneseq
    %v943 = vshrl.u32 %v942, 7
    %v944 = vsub.s32 0, %v943
    %v945 = vrot.slane %v940, %v944
    %vm947 = vcmask 15360
    %v949 = vsel %vm947, %v938, 0
    %vm951 = vcmask 1041408
    %v953 = vsel %vm951, %v939, 0
    %955 = vmatprep.subr.mxu0 0.0
    %956 = vmatpush1.msra.mxu0 0.0
    %957 = vmatprep.subr.mxu0 0.0
    %958 = vmatpush1.msra.mxu0 0.0
    %959 = vmatprep.subr.mxu0 0.0
    %960 = vmatpush1.msra.mxu0 0.0
    %961 = vmatprep.subr.mxu0 0.0
    %962 = vmatpush1.msra.mxu0 0.0
    %963 = vmatprep.subr.mxu0 0.0
    %964 = vmatpush1.msra.mxu0 0.0
    %965 = vmatprep.subr.mxu0 0.0
    %966 = vmatpush1.msra.mxu0 0.0
    %967 = vmatprep.subr.mxu0 0.0
    %968 = vmatpush1.msra.mxu0 0.0
    %969 = vmatprep.subr.mxu0 0.0
    %970 = vmatpush1.msra.mxu0 0.0
    %971 = vmatprep.subr.mxu0 0.0
    %972 = vmatpush1.msra.mxu0 0.0
    %973 = vmatprep.subr.mxu0 0.0
    %974 = vmatpush1.msra.mxu0 0.0
    %975 = vmatprep.subr.mxu0 0.0
    %976 = vmatpush1.msra.mxu0 0.0
    %977 = vmatprep.subr.mxu0 0.0
    %978 = vmatpush1.msra.mxu0 0.0
    %979 = vmatprep.subr.mxu0 0.0
    %980 = vmatpush1.msra.mxu0 0.0
    %981 = vmatprep.subr.mxu0 0.0
    %982 = vmatpush1.msra.mxu0 0.0
    %983 = vmatprep.subr.mxu0 0.0
    %984 = vmatpush1.msra.mxu0 0.0
    %985 = vmatprep.subr.mxu0 0.0
    %986 = vmatpush1.msra.mxu0 %v953
    %987 = vmatprep.subr.mxu0 0.0
    %988 = vmatpush2.msra.mxu0 0.0
    %989 = vmatprep.subr.mxu0 0.0
    %990 = vmatpush2.msra.mxu0 0.0
    %991 = vmatprep.subr.mxu0 0.0
    %992 = vmatpush2.msra.mxu0 0.0
    %993 = vmatprep.subr.mxu0 0.0
    %994 = vmatpush2.msra.mxu0 0.0
    %995 = vmatprep.subr.mxu0 0.0
    %996 = vmatpush2.msra.mxu0 0.0
    %997 = vmatprep.subr.mxu0 0.0
    %998 = vmatpush2.msra.mxu0 0.0
    %999 = vmatprep.subr.mxu0 0.0
    %1000 = vmatpush2.msra.mxu0 0.0
    %1001 = vmatprep.subr.mxu0 0.0
    %1002 = vmatpush2.msra.mxu0 0.0
    %1003 = vmatprep.subr.mxu0 0.0
    %1004 = vmatpush2.msra.mxu0 0.0
    %1005 = vmatprep.subr.mxu0 0.0
    %1006 = vmatpush2.msra.mxu0 0.0
    %1007 = vmatprep.subr.mxu0 0.0
    %1008 = vmatpush2.msra.mxu0 0.0
    %1009 = vmatprep.subr.mxu0 0.0
    %1010 = vmatpush2.msra.mxu0 0.0
    %1011 = vmatprep.subr.mxu0 0.0
    %1012 = vmatpush2.msra.mxu0 0.0
    %1013 = vmatprep.subr.mxu0 0.0
    %1014 = vmatpush2.msra.mxu0 0.0
    %1015 = vmatprep.subr.mxu0 0.0
    %1016 = vmatpush2.msra.mxu0 0.0
    %1017 = vmatprep.subr.mxu0 0.0
    %1018 = vmatpush2.msra.mxu0 0.0
    %1019 = vmatprep.mubr.f32.mxu0 0.0
    %1020 = vmatmul.mubr.f32.gmra.mxu0 %v949
    %v1021 = vpop.f32.mrf.mxu0
    %v1022 = vadd.f32 %v945, %v1021
    %v1023 = vpop.f32.mrf.mxu0
    %1024 = vdwg.mxu0
    %v1025 = vxor.u32 %v1022, 2147483648
    %v1026 = vmul.f32 %v1025, 1.442695
    %v1027 = vpow.pop %v1026
    %v1028 = vadd.f32 %v1027, 1.0
    %v1029 = vrcp.pop %v1028
    %v1030 = vmul.f32 1.0, %v1029
    %v1031 = vld [vmem:[%s8] sm:$0xff]
    %v1032 = vld [vmem:[%s8 + $0x8] sm:$0xff]
    %v1033 = vld [vmem:[%s8 + $0x10] sm:$0xff]
    %v1034 = vld [vmem:[%s8 + $0x18] sm:$0xff]
    %v1036 = vsel %vm947, %v1031, 0
    %v1039 = vsel %vm947, %v1032, 0
    %v1042 = vsel %vm947, %v1033, 0
    %v1045 = vsel %vm947, %v1034, 0
    %v1048 = vsel %vm951, %v1030, 0
    %1050 = vmatprep.subr.mxu0 0.0
    %1051 = vmatpush1.msra.mxu0 0.0
    %1052 = vmatprep.subr.mxu0 0.0
    %1053 = vmatpush1.msra.mxu0 0.0
    %1054 = vmatprep.subr.mxu0 0.0
    %1055 = vmatpush1.msra.mxu0 0.0
    %1056 = vmatprep.subr.mxu0 0.0
    %1057 = vmatpush1.msra.mxu0 0.0
    %1058 = vmatprep.subr.mxu0 0.0
    %1059 = vmatpush1.msra.mxu0 0.0
    %1060 = vmatprep.subr.mxu0 0.0
    %1061 = vmatpush1.msra.mxu0 0.0
    %1062 = vmatprep.subr.mxu0 0.0
    %1063 = vmatpush1.msra.mxu0 0.0
    %1064 = vmatprep.subr.mxu0 0.0
    %1065 = vmatpush1.msra.mxu0 0.0
    %1066 = vmatprep.subr.mxu0 0.0
    %1067 = vmatpush1.msra.mxu0 0.0
    %1068 = vmatprep.subr.mxu0 0.0
    %1069 = vmatpush1.msra.mxu0 0.0
    %1070 = vmatprep.subr.mxu0 0.0
    %1071 = vmatpush1.msra.mxu0 0.0
    %1072 = vmatprep.subr.mxu0 0.0
    %1073 = vmatpush1.msra.mxu0 0.0
    %1074 = vmatprep.subr.mxu0 0.0
    %1075 = vmatpush1.msra.mxu0 0.0
    %1076 = vmatprep.subr.mxu0 0.0
    %1077 = vmatpush1.msra.mxu0 0.0
    %1078 = vmatprep.subr.mxu0 0.0
    %1079 = vmatpush1.msra.mxu0 0.0
    %1080 = vmatprep.subr.mxu0 0.0
    %1081 = vmatpush1.msra.mxu0 %v1048
    %1082 = vmatprep.subr.mxu0 0.0
    %1083 = vmatpush2.msra.mxu0 0.0
    %1084 = vmatprep.subr.mxu0 0.0
    %1085 = vmatpush2.msra.mxu0 0.0
    %1086 = vmatprep.subr.mxu0 0.0
    %1087 = vmatpush2.msra.mxu0 0.0
    %1088 = vmatprep.subr.mxu0 0.0
    %1089 = vmatpush2.msra.mxu0 0.0
    %1090 = vmatprep.subr.mxu0 0.0
    %1091 = vmatpush2.msra.mxu0 0.0
    %1092 = vmatprep.subr.mxu0 0.0
    %1093 = vmatpush2.msra.mxu0 0.0
    %1094 = vmatprep.subr.mxu0 0.0
    %1095 = vmatpush2.msra.mxu0 0.0
    %1096 = vmatprep.subr.mxu0 0.0
    %1097 = vmatpush2.msra.mxu0 0.0
    %1098 = vmatprep.subr.mxu0 0.0
    %1099 = vmatpush2.msra.mxu0 0.0
    %1100 = vmatprep.subr.mxu0 0.0
    %1101 = vmatpush2.msra.mxu0 0.0
    %1102 = vmatprep.subr.mxu0 0.0
    %1103 = vmatpush2.msra.mxu0 0.0
    %1104 = vmatprep.subr.mxu0 0.0
    %1105 = vmatpush2.msra.mxu0 0.0
    %1106 = vmatprep.subr.mxu0 0.0
    %1107 = vmatpush2.msra.mxu0 0.0
    %1108 = vmatprep.subr.mxu0 0.0
    %1109 = vmatpush2.msra.mxu0 0.0
    %1110 = vmatprep.subr.mxu0 0.0
    %1111 = vmatpush2.msra.mxu0 0.0
    %1112 = vmatprep.subr.mxu0 0.0
    %1113 = vmatpush2.msra.mxu0 0.0
    %1114 = vmatprep.mubr.f32.mxu0 0.0
    %1115 = vmatmul.mubr.f32.gmra.mxu0 %v1036
    %v1116 = vpop.f32.mrf.mxu0
    %v1117 = vadd.f32 0.0, %v1116
    %v1118 = vpop.f32.mrf.mxu0
    %1119 = vmatprep.mubr.f32.mxu0 0.0
    %1120 = vmatmul.mubr.f32.gmra.mxu0 %v1039
    %v1121 = vpop.f32.mrf.mxu0
    %v1122 = vadd.f32 0.0, %v1121
    %v1123 = vpop.f32.mrf.mxu0
    %1124 = vmatprep.mubr.f32.mxu0 0.0
    %1125 = vmatmul.mubr.f32.gmra.mxu0 %v1042
    %v1126 = vpop.f32.mrf.mxu0
    %v1127 = vadd.f32 0.0, %v1126
    %v1128 = vpop.f32.mrf.mxu0
    %1129 = vmatprep.mubr.f32.mxu0 0.0
    %1130 = vmatmul.mubr.f32.gmra.mxu0 %v1045
    %v1131 = vpop.f32.mrf.mxu0
    %v1132 = vadd.f32 0.0, %v1131
    %v1133 = vpop.f32.mrf.mxu0
    %1134 = vdwg.mxu0
    %v1135 = vmul.f32 %v756, %v1117
    %v1136 = vmul.f32 %v759, %v1122
    %v1137 = vmul.f32 %v764, %v1127
    %v1138 = vmul.f32 %v767, %v1132
    %v1139 = vadd.f32 %v1135, %v62
    %v1140 = vadd.f32 %v1136, %v63
    %v1141 = vadd.f32 %v1137, %v64
    %v1142 = vadd.f32 %v1138, %v65
    %v1143 = vrot.slane %v1139, 7
    %v1144 = vrot.slane %v1140, 7
    %v1145 = vrot.slane %v1141, 7
    %v1146 = vrot.slane %v1142, 7
    %v1147 = vsel %vm72, %v1145, %v1146
    %v1148 = vsel %vm72, %v1144, %v1145
    %v1149 = vsel %vm72, %v1143, %v1144
    %v1150 = vsel %vm72, %v1146, %v1143
    %v1151 = vmul.f32 %v1150, %v80
    %v1152 = vmul.f32 %v1149, %v85
    %v1153 = vmul.f32 %v1148, %v90
    %v1154 = vmul.f32 %v1147, %v95
    %v1155 = vrot.slane %v1139, 1
    %v1156 = vrot.slane %v1140, 1
    %v1157 = vrot.slane %v1141, 1
    %v1158 = vrot.slane %v1142, 1
    %v1159 = vsel %vm105, %v1157, %v1158
    %v1160 = vsel %vm105, %v1156, %v1157
    %v1161 = vsel %vm105, %v1155, %v1156
    %v1162 = vsel %vm105, %v1158, %v1155
    %v1163 = vmul.f32 %v1161, %v113
    %v1164 = vmul.f32 %v1160, %v118
    %v1165 = vmul.f32 %v1159, %v123
    %v1166 = vmul.f32 %v1162, %v128
    %v1167 = vpack.c.bf16 %v1152, %v1151
    %v1168 = vpack.c.bf16 %v1140, %v1139
    %v1169 = vpack.c.bf16 %v1164, %v1163
    %v1170 = vpack.c.bf16 %v1154, %v1153
    %v1171 = vpack.c.bf16 %v1142, %v1141
    %v1172 = vpack.c.bf16 %v1166, %v1165
    %s1173 = scalar_lea.vmem [#allocation2], 384
    %v1174 = vld [vmem:[%s1173] sm:$0xf]
    %v1175 = vld [vmem:[%s1173 + $0x4] sm:$0xf]
    %v1176 = vld [vmem:[%s1173 + $0x8] sm:$0xf]
    %v1177 = vld [vmem:[%s1173 + $0xc] sm:$0xf]
    %v1178 = vld [vmem:[%s1173 + $0x10] sm:$0xf]
    %v1179 = vld [vmem:[%s1173 + $0x14] sm:$0xf]
    %v1180 = vld [vmem:[%s1173 + $0x18] sm:$0xf]
    %v1181 = vld [vmem:[%s1173 + $0x1c] sm:$0xf]
    %v1182 = vld [vmem:[%s1173 + $0x20] sm:$0xf]
    %v1183 = vld [vmem:[%s1173 + $0x24] sm:$0xf]
    %v1184 = vld [vmem:[%s1173 + $0x28] sm:$0xf]
    %v1185 = vld [vmem:[%s1173 + $0x2c] sm:$0xf]
    %v1186 = vld [vmem:[%s1173 + $0x30] sm:$0xf]
    %v1187 = vld [vmem:[%s1173 + $0x34] sm:$0xf]
    %v1188 = vld [vmem:[%s1173 + $0x38] sm:$0xf]
    %v1189 = vld [vmem:[%s1173 + $0x3c] sm:$0xf]
    %v1190 = vld [vmem:[%s1173 + $0x40] sm:$0xf]
    %v1191 = vld [vmem:[%s1173 + $0x44] sm:$0xf]
    %v1192 = vld [vmem:[%s1173 + $0x48] sm:$0xf]
    %v1193 = vld [vmem:[%s1173 + $0x4c] sm:$0xf]
    %v1194 = vld [vmem:[%s1173 + $0x50] sm:$0xf]
    %v1195 = vld [vmem:[%s1173 + $0x54] sm:$0xf]
    %v1196 = vld [vmem:[%s1173 + $0x58] sm:$0xf]
    %v1197 = vld [vmem:[%s1173 + $0x5c] sm:$0xf]
    %v1198 = vld [vmem:[%s1173 + $0x60] sm:$0xf]
    %v1199 = vld [vmem:[%s1173 + $0x64] sm:$0xf]
    %v1200 = vld [vmem:[%s1173 + $0x68] sm:$0xf]
    %v1201 = vld [vmem:[%s1173 + $0x6c] sm:$0xf]
    %v1202 = vld [vmem:[%s1173 + $0x70] sm:$0xf]
    %v1203 = vld [vmem:[%s1173 + $0x74] sm:$0xf]
    %v1204 = vld [vmem:[%s1173 + $0x78] sm:$0xf]
    %v1205 = vld [vmem:[%s1173 + $0x7c] sm:$0xf]
    %v1206 = vld [vmem:[%s1173 + $0x80] sm:$0xf]
    %v1207 = vld [vmem:[%s1173 + $0x84] sm:$0xf]
    %v1208 = vld [vmem:[%s1173 + $0x88] sm:$0xf]
    %v1209 = vld [vmem:[%s1173 + $0x8c] sm:$0xf]
    %v1210 = vld [vmem:[%s1173 + $0x90] sm:$0xf]
    %v1211 = vld [vmem:[%s1173 + $0x94] sm:$0xf]
    %v1212 = vld [vmem:[%s1173 + $0x98] sm:$0xf]
    %v1213 = vld [vmem:[%s1173 + $0x9c] sm:$0xf]
    %v1214 = vld [vmem:[%s1173 + $0xa0] sm:$0xf]
    %v1215 = vld [vmem:[%s1173 + $0xa4] sm:$0xf]
    %v1216 = vld [vmem:[%s1173 + $0xa8] sm:$0xf]
    %v1217 = vld [vmem:[%s1173 + $0xac] sm:$0xf]
    %v1218 = vld [vmem:[%s1173 + $0xb0] sm:$0xf]
    %v1219 = vld [vmem:[%s1173 + $0xb4] sm:$0xf]
    %v1220 = vld [vmem:[%s1173 + $0xb8] sm:$0xf]
    %v1221 = vld [vmem:[%s1173 + $0xbc] sm:$0xf]
    %s1222 = scalar_lea.vmem %s2, 2
    %v1223 = vld [vmem:[%s1222] sm:$0x1]
    %v1225 = vlaneseq
    %v1226 = vshrl.u32 %v1225, 7
    %v1227 = vsub.s32 0, %v1226
    %v1228 = vrot.slane %v1223, %v1227
    %v1278 = vunpack.c.l.b16 %v1174
    %v1279 = vunpack.c.l.b16 %v1175
    %v1280 = vunpack.c.l.b16 %v1176
    %v1281 = vunpack.c.l.b16 %v1177
    %v1282 = vunpack.c.l.b16 %v1178
    %v1283 = vunpack.c.l.b16 %v1179
    %v1284 = vunpack.c.l.b16 %v1180
    %v1285 = vunpack.c.l.b16 %v1181
    %v1286 = vunpack.c.l.b16 %v1182
    %v1287 = vunpack.c.l.b16 %v1183
    %v1288 = vunpack.c.l.b16 %v1184
    %v1289 = vunpack.c.l.b16 %v1185
    %v1290 = vunpack.c.l.b16 %v1186
    %v1291 = vunpack.c.l.b16 %v1187
    %v1292 = vunpack.c.l.b16 %v1188
    %v1293 = vunpack.c.l.b16 %v1189
    %v1294 = vunpack.c.l.b16 %v1190
    %v1295 = vunpack.c.l.b16 %v1191
    %v1296 = vunpack.c.l.b16 %v1192
    %v1297 = vunpack.c.l.b16 %v1193
    %v1298 = vunpack.c.l.b16 %v1194
    %v1299 = vunpack.c.l.b16 %v1195
    %v1300 = vunpack.c.l.b16 %v1196
    %v1301 = vunpack.c.l.b16 %v1197
    %v1302 = vunpack.c.l.b16 %v1198
    %v1303 = vunpack.c.l.b16 %v1199
    %v1304 = vunpack.c.l.b16 %v1200
    %v1305 = vunpack.c.l.b16 %v1201
    %v1306 = vunpack.c.l.b16 %v1202
    %v1307 = vunpack.c.l.b16 %v1203
    %v1308 = vunpack.c.l.b16 %v1204
    %v1309 = vunpack.c.l.b16 %v1205
    %v1310 = vunpack.c.l.b16 %v1206
    %v1311 = vunpack.c.l.b16 %v1207
    %v1312 = vunpack.c.l.b16 %v1208
    %v1313 = vunpack.c.l.b16 %v1209
    %v1314 = vunpack.c.l.b16 %v1210
    %v1315 = vunpack.c.l.b16 %v1211
    %v1316 = vunpack.c.l.b16 %v1212
    %v1317 = vunpack.c.l.b16 %v1213
    %v1318 = vunpack.c.l.b16 %v1214
    %v1319 = vunpack.c.l.b16 %v1215
    %v1320 = vunpack.c.l.b16 %v1216
    %v1321 = vunpack.c.l.b16 %v1217
    %v1322 = vunpack.c.l.b16 %v1218
    %v1323 = vunpack.c.l.b16 %v1219
    %v1324 = vunpack.c.l.b16 %v1220
    %v1325 = vunpack.c.l.b16 %v1221
    %v1326 = vpack.c.b16 %v1279, %v1278
    %v1327 = vpack.c.b16 %v1281, %v1280
    %v1328 = vpack.c.b16 %v1283, %v1282
    %v1329 = vpack.c.b16 %v1285, %v1284
    %v1330 = vpack.c.b16 %v1287, %v1286
    %v1331 = vpack.c.b16 %v1289, %v1288
    %v1332 = vpack.c.b16 %v1291, %v1290
    %v1333 = vpack.c.b16 %v1293, %v1292
    %v1334 = vpack.c.b16 %v1295, %v1294
    %v1335 = vpack.c.b16 %v1297, %v1296
    %v1336 = vpack.c.b16 %v1299, %v1298
    %v1337 = vpack.c.b16 %v1301, %v1300
    %v1338 = vpack.c.b16 %v1303, %v1302
    %v1339 = vpack.c.b16 %v1305, %v1304
    %v1340 = vpack.c.b16 %v1307, %v1306
    %v1341 = vpack.c.b16 %v1309, %v1308
    %v1342 = vpack.c.b16 %v1311, %v1310
    %v1343 = vpack.c.b16 %v1313, %v1312
    %v1344 = vpack.c.b16 %v1315, %v1314
    %v1345 = vpack.c.b16 %v1317, %v1316
    %v1346 = vpack.c.b16 %v1319, %v1318
    %v1347 = vpack.c.b16 %v1321, %v1320
    %v1348 = vpack.c.b16 %v1323, %v1322
    %v1349 = vpack.c.b16 %v1325, %v1324
    %1374 = vmatprep.subr.bf16.mxu0 0
    %1375 = vmatpush1.bf16.msra.mxu0 %v1333
    %1376 = vmatprep.subr.bf16.mxu0 0
    %1377 = vmatpush1.bf16.msra.mxu0 %v1332
    %1378 = vmatprep.subr.bf16.mxu0 0
    %1379 = vmatpush1.bf16.msra.mxu0 %v1331
    %1380 = vmatprep.subr.bf16.mxu0 0
    %1381 = vmatpush1.bf16.msra.mxu0 %v1330
    %1382 = vmatprep.subr.bf16.mxu0 0
    %1383 = vmatpush1.bf16.msra.mxu0 %v1329
    %1384 = vmatprep.subr.bf16.mxu0 0
    %1385 = vmatpush1.bf16.msra.mxu0 %v1328
    %1386 = vmatprep.subr.bf16.mxu0 0
    %1387 = vmatpush1.bf16.msra.mxu0 %v1327
    %1388 = vmatprep.subr.bf16.mxu0 0
    %1389 = vmatpush1.bf16.msra.mxu0 %v1326
    %1390 = vmatprep.subr.bf16.mxu0 0
    %1391 = vmatpush2.bf16.msra.mxu0 %v1341
    %1392 = vmatprep.subr.bf16.mxu0 0
    %1393 = vmatpush2.bf16.msra.mxu0 %v1340
    %1394 = vmatprep.subr.bf16.mxu0 0
    %1395 = vmatpush2.bf16.msra.mxu0 %v1339
    %1396 = vmatprep.subr.bf16.mxu0 0
    %1397 = vmatpush2.bf16.msra.mxu0 %v1338
    %1398 = vmatprep.subr.bf16.mxu0 0
    %1399 = vmatpush2.bf16.msra.mxu0 %v1337
    %1400 = vmatprep.subr.bf16.mxu0 0
    %1401 = vmatpush2.bf16.msra.mxu0 %v1336
    %1402 = vmatprep.subr.bf16.mxu0 0
    %1403 = vmatpush2.bf16.msra.mxu0 %v1335
    %1404 = vmatprep.subr.bf16.mxu0 0
    %1405 = vmatpush2.bf16.msra.mxu0 %v1334
    %1406 = vmatprep.mubr.bf16.mxu0 %v1168
    %1407 = vmatmul.mubr.bf16.gmra.mxu0 %v1167
    %v1408 = vpop.f32.mrf.mxu0
    %v1409 = vadd.f32 %v1228, %v1408
    %v1410 = vpop.f32.mrf.mxu0
    %v1411 = vpop.f32.mrf.mxu0
    %v1412 = vadd.f32 %v1228, %v1411
    %v1413 = vpop.f32.mrf.mxu0
    %1414 = vmatprep.mubr.bf16.mxu0 %v1171
    %1415 = vmatmul.mubr.bf16.gmra.mxu0 %v1170
    %v1416 = vpop.f32.mrf.mxu0
    %v1417 = vadd.f32 %v1228, %v1416
    %v1418 = vpop.f32.mrf.mxu0
    %v1419 = vpop.f32.mrf.mxu0
    %v1420 = vadd.f32 %v1228, %v1419
    %v1421 = vpop.f32.mrf.mxu0
    %1422 = vdwg.mxu0
    %1423 = vmatprep.subr.bf16.mxu0 0
    %1424 = vmatpush1.bf16.msra.mxu0 %v1349
    %1425 = vmatprep.subr.bf16.mxu0 0
    %1426 = vmatpush1.bf16.msra.mxu0 %v1348
    %1427 = vmatprep.subr.bf16.mxu0 0
    %1428 = vmatpush1.bf16.msra.mxu0 %v1347
    %1429 = vmatprep.subr.bf16.mxu0 0
    %1430 = vmatpush1.bf16.msra.mxu0 %v1346
    %1431 = vmatprep.subr.bf16.mxu0 0
    %1432 = vmatpush1.bf16.msra.mxu0 %v1345
    %1433 = vmatprep.subr.bf16.mxu0 0
    %1434 = vmatpush1.bf16.msra.mxu0 %v1344
    %1435 = vmatprep.subr.bf16.mxu0 0
    %1436 = vmatpush1.bf16.msra.mxu0 %v1343
    %1437 = vmatprep.subr.bf16.mxu0 0
    %1438 = vmatpush1.bf16.msra.mxu0 %v1342
    %1439 = vmatprep.subr.bf16.mxu0 0
    %1440 = vmatpush2.bf16.msra.mxu0 0
    %1441 = vmatprep.subr.bf16.mxu0 0
    %1442 = vmatpush2.bf16.msra.mxu0 0
    %1443 = vmatprep.subr.bf16.mxu0 0
    %1444 = vmatpush2.bf16.msra.mxu0 0
    %1445 = vmatprep.subr.bf16.mxu0 0
    %1446 = vmatpush2.bf16.msra.mxu0 0
    %1447 = vmatprep.subr.bf16.mxu0 0
    %1448 = vmatpush2.bf16.msra.mxu0 0
    %1449 = vmatprep.subr.bf16.mxu0 0
    %1450 = vmatpush2.bf16.msra.mxu0 0
    %1451 = vmatprep.subr.bf16.mxu0 0
    %1452 = vmatpush2.bf16.msra.mxu0 0
    %1453 = vmatprep.subr.bf16.mxu0 0
    %1454 = vmatpush2.bf16.msra.mxu0 0
    %1455 = vmatprep.mubr.bf16.mxu0 0
    %1456 = vmatmul.mubr.bf16.gmra.mxu0 %v1169
    %v1457 = vpop.f32.mrf.mxu0
    %v1458 = vadd.f32 %v1409, %v1457
    %v1459 = vpop.f32.mrf.mxu0
    %v1460 = vpop.f32.mrf.mxu0
    %v1461 = vadd.f32 %v1412, %v1460
    %v1462 = vpop.f32.mrf.mxu0
    %1463 = vmatprep.mubr.bf16.mxu0 0
    %1464 = vmatmul.mubr.bf16.gmra.mxu0 %v1172
    %v1465 = vpop.f32.mrf.mxu0
    %v1466 = vadd.f32 %v1417, %v1465
    %v1467 = vpop.f32.mrf.mxu0
    %v1468 = vpop.f32.mrf.mxu0
    %v1469 = vadd.f32 %v1420, %v1468
    %v1470 = vpop.f32.mrf.mxu0
    %1471 = vdwg.mxu0
    %v1472 = vmax.f32 %v1458, 0.0
    %v1473 = vmax.f32 %v1461, 0.0
    %v1474 = vmax.f32 %v1466, 0.0
    %v1475 = vmax.f32 %v1469, 0.0
    %v1476 = vrot.slane %v1472, 7
    %v1477 = vrot.slane %v1473, 7
    %v1478 = vrot.slane %v1474, 7
    %v1479 = vrot.slane %v1475, 7
    %v1480 = vsel %vm72, %v1478, %v1479
    %v1481 = vsel %vm72, %v1477, %v1478
    %v1482 = vsel %vm72, %v1476, %v1477
    %v1483 = vsel %vm72, %v1479, %v1476
    %v1484 = vmul.f32 %v1483, %v80
    %v1485 = vmul.f32 %v1482, %v85
    %v1486 = vmul.f32 %v1481, %v90
    %v1487 = vmul.f32 %v1480, %v95
    %v1488 = vrot.slane %v1472, 1
    %v1489 = vrot.slane %v1473, 1
    %v1490 = vrot.slane %v1474, 1
    %v1491 = vrot.slane %v1475, 1
    %v1492 = vsel %vm105, %v1490, %v1491
    %v1493 = vsel %vm105, %v1489, %v1490
    %v1494 = vsel %vm105, %v1488, %v1489
    %v1495 = vsel %vm105, %v1491, %v1488
    %v1496 = vmul.f32 %v1494, %v113
    %v1497 = vmul.f32 %v1493, %v118
    %v1498 = vmul.f32 %v1492, %v123
    %v1499 = vmul.f32 %v1495, %v128
    %v1500 = vpack.c.bf16 %v1485, %v1484
    %v1501 = vpack.c.bf16 %v1473, %v1472
    %v1502 = vpack.c.bf16 %v1497, %v1496
    %v1503 = vpack.c.bf16 %v1487, %v1486
    %v1504 = vpack.c.bf16 %v1475, %v1474
    %v1505 = vpack.c.bf16 %v1499, %v1498
    %s1506 = scalar_lea.vmem [#allocation2], 576
    %v1507 = vld [vmem:[%s1506] sm:$0xf]
    %v1508 = vld [vmem:[%s1506 + $0x4] sm:$0xf]
    %v1509 = vld [vmem:[%s1506 + $0x8] sm:$0xf]
    %v1510 = vld [vmem:[%s1506 + $0xc] sm:$0xf]
    %v1511 = vld [vmem:[%s1506 + $0x10] sm:$0xf]
    %v1512 = vld [vmem:[%s1506 + $0x14] sm:$0xf]
    %v1513 = vld [vmem:[%s1506 + $0x18] sm:$0xf]
    %v1514 = vld [vmem:[%s1506 + $0x1c] sm:$0xf]
    %v1515 = vld [vmem:[%s1506 + $0x20] sm:$0xf]
    %v1516 = vld [vmem:[%s1506 + $0x24] sm:$0xf]
    %v1517 = vld [vmem:[%s1506 + $0x28] sm:$0xf]
    %v1518 = vld [vmem:[%s1506 + $0x2c] sm:$0xf]
    %v1519 = vld [vmem:[%s1506 + $0x30] sm:$0xf]
    %v1520 = vld [vmem:[%s1506 + $0x34] sm:$0xf]
    %v1521 = vld [vmem:[%s1506 + $0x38] sm:$0xf]
    %v1522 = vld [vmem:[%s1506 + $0x3c] sm:$0xf]
    %v1523 = vld [vmem:[%s1506 + $0x40] sm:$0xf]
    %v1524 = vld [vmem:[%s1506 + $0x44] sm:$0xf]
    %v1525 = vld [vmem:[%s1506 + $0x48] sm:$0xf]
    %v1526 = vld [vmem:[%s1506 + $0x4c] sm:$0xf]
    %v1527 = vld [vmem:[%s1506 + $0x50] sm:$0xf]
    %v1528 = vld [vmem:[%s1506 + $0x54] sm:$0xf]
    %v1529 = vld [vmem:[%s1506 + $0x58] sm:$0xf]
    %v1530 = vld [vmem:[%s1506 + $0x5c] sm:$0xf]
    %v1531 = vld [vmem:[%s1506 + $0x60] sm:$0xf]
    %v1532 = vld [vmem:[%s1506 + $0x64] sm:$0xf]
    %v1533 = vld [vmem:[%s1506 + $0x68] sm:$0xf]
    %v1534 = vld [vmem:[%s1506 + $0x6c] sm:$0xf]
    %v1535 = vld [vmem:[%s1506 + $0x70] sm:$0xf]
    %v1536 = vld [vmem:[%s1506 + $0x74] sm:$0xf]
    %v1537 = vld [vmem:[%s1506 + $0x78] sm:$0xf]
    %v1538 = vld [vmem:[%s1506 + $0x7c] sm:$0xf]
    %v1539 = vld [vmem:[%s1506 + $0x80] sm:$0xf]
    %v1540 = vld [vmem:[%s1506 + $0x84] sm:$0xf]
    %v1541 = vld [vmem:[%s1506 + $0x88] sm:$0xf]
    %v1542 = vld [vmem:[%s1506 + $0x8c] sm:$0xf]
    %v1543 = vld [vmem:[%s1506 + $0x90] sm:$0xf]
    %v1544 = vld [vmem:[%s1506 + $0x94] sm:$0xf]
    %v1545 = vld [vmem:[%s1506 + $0x98] sm:$0xf]
    %v1546 = vld [vmem:[%s1506 + $0x9c] sm:$0xf]
    %v1547 = vld [vmem:[%s1506 + $0xa0] sm:$0xf]
    %v1548 = vld [vmem:[%s1506 + $0xa4] sm:$0xf]
    %v1549 = vld [vmem:[%s1506 + $0xa8] sm:$0xf]
    %v1550 = vld [vmem:[%s1506 + $0xac] sm:$0xf]
    %v1551 = vld [vmem:[%s1506 + $0xb0] sm:$0xf]
    %v1552 = vld [vmem:[%s1506 + $0xb4] sm:$0xf]
    %v1553 = vld [vmem:[%s1506 + $0xb8] sm:$0xf]
    %v1554 = vld [vmem:[%s1506 + $0xbc] sm:$0xf]
    %s1555 = scalar_lea.vmem %s2, 3
    %v1556 = vld [vmem:[%s1555] sm:$0x1]
    %v1558 = vlaneseq
    %v1559 = vshrl.u32 %v1558, 7
    %v1560 = vsub.s32 0, %v1559
    %v1561 = vrot.slane %v1556, %v1560
    %v1611 = vunpack.c.l.b16 %v1507
    %v1612 = vunpack.c.l.b16 %v1508
    %v1613 = vunpack.c.l.b16 %v1509
    %v1614 = vunpack.c.l.b16 %v1510
    %v1615 = vunpack.c.l.b16 %v1511
    %v1616 = vunpack.c.l.b16 %v1512
    %v1617 = vunpack.c.l.b16 %v1513
    %v1618 = vunpack.c.l.b16 %v1514
    %v1619 = vunpack.c.l.b16 %v1515
    %v1620 = vunpack.c.l.b16 %v1516
    %v1621 = vunpack.c.l.b16 %v1517
    %v1622 = vunpack.c.l.b16 %v1518
    %v1623 = vunpack.c.l.b16 %v1519
    %v1624 = vunpack.c.l.b16 %v1520
    %v1625 = vunpack.c.l.b16 %v1521
    %v1626 = vunpack.c.l.b16 %v1522
    %v1627 = vunpack.c.l.b16 %v1523
    %v1628 = vunpack.c.l.b16 %v1524
    %v1629 = vunpack.c.l.b16 %v1525
    %v1630 = vunpack.c.l.b16 %v1526
    %v1631 = vunpack.c.l.b16 %v1527
    %v1632 = vunpack.c.l.b16 %v1528
    %v1633 = vunpack.c.l.b16 %v1529
    %v1634 = vunpack.c.l.b16 %v1530
    %v1635 = vunpack.c.l.b16 %v1531
    %v1636 = vunpack.c.l.b16 %v1532
    %v1637 = vunpack.c.l.b16 %v1533
    %v1638 = vunpack.c.l.b16 %v1534
    %v1639 = vunpack.c.l.b16 %v1535
    %v1640 = vunpack.c.l.b16 %v1536
    %v1641 = vunpack.c.l.b16 %v1537
    %v1642 = vunpack.c.l.b16 %v1538
    %v1643 = vunpack.c.l.b16 %v1539
    %v1644 = vunpack.c.l.b16 %v1540
    %v1645 = vunpack.c.l.b16 %v1541
    %v1646 = vunpack.c.l.b16 %v1542
    %v1647 = vunpack.c.l.b16 %v1543
    %v1648 = vunpack.c.l.b16 %v1544
    %v1649 = vunpack.c.l.b16 %v1545
    %v1650 = vunpack.c.l.b16 %v1546
    %v1651 = vunpack.c.l.b16 %v1547
    %v1652 = vunpack.c.l.b16 %v1548
    %v1653 = vunpack.c.l.b16 %v1549
    %v1654 = vunpack.c.l.b16 %v1550
    %v1655 = vunpack.c.l.b16 %v1551
    %v1656 = vunpack.c.l.b16 %v1552
    %v1657 = vunpack.c.l.b16 %v1553
    %v1658 = vunpack.c.l.b16 %v1554
    %v1659 = vpack.c.b16 %v1612, %v1611
    %v1660 = vpack.c.b16 %v1614, %v1613
    %v1661 = vpack.c.b16 %v1616, %v1615
    %v1662 = vpack.c.b16 %v1618, %v1617
    %v1663 = vpack.c.b16 %v1620, %v1619
    %v1664 = vpack.c.b16 %v1622, %v1621
    %v1665 = vpack.c.b16 %v1624, %v1623
    %v1666 = vpack.c.b16 %v1626, %v1625
    %v1667 = vpack.c.b16 %v1628, %v1627
    %v1668 = vpack.c.b16 %v1630, %v1629
    %v1669 = vpack.c.b16 %v1632, %v1631
    %v1670 = vpack.c.b16 %v1634, %v1633
    %v1671 = vpack.c.b16 %v1636, %v1635
    %v1672 = vpack.c.b16 %v1638, %v1637
    %v1673 = vpack.c.b16 %v1640, %v1639
    %v1674 = vpack.c.b16 %v1642, %v1641
    %v1675 = vpack.c.b16 %v1644, %v1643
    %v1676 = vpack.c.b16 %v1646, %v1645
    %v1677 = vpack.c.b16 %v1648, %v1647
    %v1678 = vpack.c.b16 %v1650, %v1649
    %v1679 = vpack.c.b16 %v1652, %v1651
    %v1680 = vpack.c.b16 %v1654, %v1653
    %v1681 = vpack.c.b16 %v1656, %v1655
    %v1682 = vpack.c.b16 %v1658, %v1657
    %1707 = vmatprep.subr.bf16.mxu0 0
    %1708 = vmatpush1.bf16.msra.mxu0 %v1666
    %1709 = vmatprep.subr.bf16.mxu0 0
    %1710 = vmatpush1.bf16.msra.mxu0 %v1665
    %1711 = vmatprep.subr.bf16.mxu0 0
    %1712 = vmatpush1.bf16.msra.mxu0 %v1664
    %1713 = vmatprep.subr.bf16.mxu0 0
    %1714 = vmatpush1.bf16.msra.mxu0 %v1663
    %1715 = vmatprep.subr.bf16.mxu0 0
    %1716 = vmatpush1.bf16.msra.mxu0 %v1662
    %1717 = vmatprep.subr.bf16.mxu0 0
    %1718 = vmatpush1.bf16.msra.mxu0 %v1661
    %1719 = vmatprep.subr.bf16.mxu0 0
    %1720 = vmatpush1.bf16.msra.mxu0 %v1660
    %1721 = vmatprep.subr.bf16.mxu0 0
    %1722 = vmatpush1.bf16.msra.mxu0 %v1659
    %1723 = vmatprep.subr.bf16.mxu0 0
    %1724 = vmatpush2.bf16.msra.mxu0 %v1674
    %1725 = vmatprep.subr.bf16.mxu0 0
    %1726 = vmatpush2.bf16.msra.mxu0 %v1673
    %1727 = vmatprep.subr.bf16.mxu0 0
    %1728 = vmatpush2.bf16.msra.mxu0 %v1672
    %1729 = vmatprep.subr.bf16.mxu0 0
    %1730 = vmatpush2.bf16.msra.mxu0 %v1671
    %1731 = vmatprep.subr.bf16.mxu0 0
    %1732 = vmatpush2.bf16.msra.mxu0 %v1670
    %1733 = vmatprep.subr.bf16.mxu0 0
    %1734 = vmatpush2.bf16.msra.mxu0 %v1669
    %1735 = vmatprep.subr.bf16.mxu0 0
    %1736 = vmatpush2.bf16.msra.mxu0 %v1668
    %1737 = vmatprep.subr.bf16.mxu0 0
    %1738 = vmatpush2.bf16.msra.mxu0 %v1667
    %1739 = vmatprep.mubr.bf16.mxu0 %v1501
    %1740 = vmatmul.mubr.bf16.gmra.mxu0 %v1500
    %v1741 = vpop.f32.mrf.mxu0
    %v1742 = vadd.f32 %v1561, %v1741
    %v1743 = vpop.f32.mrf.mxu0
    %v1744 = vpop.f32.mrf.mxu0
    %v1745 = vadd.f32 %v1561, %v1744
    %v1746 = vpop.f32.mrf.mxu0
    %1747 = vmatprep.mubr.bf16.mxu0 %v1504
    %1748 = vmatmul.mubr.bf16.gmra.mxu0 %v1503
    %v1749 = vpop.f32.mrf.mxu0
    %v1750 = vadd.f32 %v1561, %v1749
    %v1751 = vpop.f32.mrf.mxu0
    %v1752 = vpop.f32.mrf.mxu0
    %v1753 = vadd.f32 %v1561, %v1752
    %v1754 = vpop.f32.mrf.mxu0
    %1755 = vdwg.mxu0
    %1756 = vmatprep.subr.bf16.mxu0 0
    %1757 = vmatpush1.bf16.msra.mxu0 %v1682
    %1758 = vmatprep.subr.bf16.mxu0 0
    %1759 = vmatpush1.bf16.msra.mxu0 %v1681
    %1760 = vmatprep.subr.bf16.mxu0 0
    %1761 = vmatpush1.bf16.msra.mxu0 %v1680
    %1762 = vmatprep.subr.bf16.mxu0 0
    %1763 = vmatpush1.bf16.msra.mxu0 %v1679
    %1764 = vmatprep.subr.bf16.mxu0 0
    %1765 = vmatpush1.bf16.msra.mxu0 %v1678
    %1766 = vmatprep.subr.bf16.mxu0 0
    %1767 = vmatpush1.bf16.msra.mxu0 %v1677
    %1768 = vmatprep.subr.bf16.mxu0 0
    %1769 = vmatpush1.bf16.msra.mxu0 %v1676
    %1770 = vmatprep.subr.bf16.mxu0 0
    %1771 = vmatpush1.bf16.msra.mxu0 %v1675
    %1772 = vmatprep.subr.bf16.mxu0 0
    %1773 = vmatpush2.bf16.msra.mxu0 0
    %1774 = vmatprep.subr.bf16.mxu0 0
    %1775 = vmatpush2.bf16.msra.mxu0 0
    %1776 = vmatprep.subr.bf16.mxu0 0
    %1777 = vmatpush2.bf16.msra.mxu0 0
    %1778 = vmatprep.subr.bf16.mxu0 0
    %1779 = vmatpush2.bf16.msra.mxu0 0
    %1780 = vmatprep.subr.bf16.mxu0 0
    %1781 = vmatpush2.bf16.msra.mxu0 0
    %1782 = vmatprep.subr.bf16.mxu0 0
    %1783 = vmatpush2.bf16.msra.mxu0 0
    %1784 = vmatprep.subr.bf16.mxu0 0
    %1785 = vmatpush2.bf16.msra.mxu0 0
    %1786 = vmatprep.subr.bf16.mxu0 0
    %1787 = vmatpush2.bf16.msra.mxu0 0
    %1788 = vmatprep.mubr.bf16.mxu0 0
    %1789 = vmatmul.mubr.bf16.gmra.mxu0 %v1502
    %v1790 = vpop.f32.mrf.mxu0
    %v1791 = vadd.f32 %v1742, %v1790
    %v1792 = vpop.f32.mrf.mxu0
    %v1793 = vpop.f32.mrf.mxu0
    %v1794 = vadd.f32 %v1745, %v1793
    %v1795 = vpop.f32.mrf.mxu0
    %1796 = vmatprep.mubr.bf16.mxu0 0
    %1797 = vmatmul.mubr.bf16.gmra.mxu0 %v1505
    %v1798 = vpop.f32.mrf.mxu0
    %v1799 = vadd.f32 %v1750, %v1798
    %v1800 = vpop.f32.mrf.mxu0
    %v1801 = vpop.f32.mrf.mxu0
    %v1802 = vadd.f32 %v1753, %v1801
    %v1803 = vpop.f32.mrf.mxu0
    %1804 = vdwg.mxu0
    %1805 = vmatprep.subr.mxu0 0.0
    %1806 = vmatpush1.msra.mxu0 0.0
    %1807 = vmatprep.subr.mxu0 0.0
    %1808 = vmatpush1.msra.mxu0 0.0
    %1809 = vmatprep.subr.mxu0 0.0
    %1810 = vmatpush1.msra.mxu0 0.0
    %1811 = vmatprep.subr.mxu0 0.0
    %1812 = vmatpush1.msra.mxu0 0.0
    %1813 = vmatprep.subr.mxu0 0.0
    %1814 = vmatpush1.msra.mxu0 0.0
    %1815 = vmatprep.subr.mxu0 0.0
    %1816 = vmatpush1.msra.mxu0 0.0
    %1817 = vmatprep.subr.mxu0 0.0
    %1818 = vmatpush1.msra.mxu0 0.0
    %1819 = vmatprep.subr.mxu0 0.0
    %1820 = vmatpush1.msra.mxu0 0.0
    %1821 = vmatprep.subr.mxu0 0.0
    %1822 = vmatpush1.msra.mxu0 0.0
    %1823 = vmatprep.subr.mxu0 0.0
    %1824 = vmatpush1.msra.mxu0 0.0
    %1825 = vmatprep.subr.mxu0 0.0
    %1826 = vmatpush1.msra.mxu0 0.0
    %1827 = vmatprep.subr.mxu0 0.0
    %1828 = vmatpush1.msra.mxu0 0.0
    %1829 = vmatprep.subr.mxu0 0.0
    %1830 = vmatpush1.msra.mxu0 %v1802
    %1831 = vmatprep.subr.mxu0 0.0
    %1832 = vmatpush1.msra.mxu0 %v1799
    %1833 = vmatprep.subr.mxu0 0.0
    %1834 = vmatpush1.msra.mxu0 %v1794
    %1835 = vmatprep.subr.mxu0 0.0
    %1836 = vmatpush1.msra.mxu0 %v1791
    %1837 = vmatprep.subr.mxu0 0.0
    %1838 = vmatpush2.msra.mxu0 0.0
    %1839 = vmatprep.subr.mxu0 0.0
    %1840 = vmatpush2.msra.mxu0 0.0
    %1841 = vmatprep.subr.mxu0 0.0
    %1842 = vmatpush2.msra.mxu0 0.0
    %1843 = vmatprep.subr.mxu0 0.0
    %1844 = vmatpush2.msra.mxu0 0.0
    %1845 = vmatprep.subr.mxu0 0.0
    %1846 = vmatpush2.msra.mxu0 0.0
    %1847 = vmatprep.subr.mxu0 0.0
    %1848 = vmatpush2.msra.mxu0 0.0
    %1849 = vmatprep.subr.mxu0 0.0
    %1850 = vmatpush2.msra.mxu0 0.0
    %1851 = vmatprep.subr.mxu0 0.0
    %1852 = vmatpush2.msra.mxu0 0.0
    %1853 = vmatprep.subr.mxu0 0.0
    %1854 = vmatpush2.msra.mxu0 0.0
    %1855 = vmatprep.subr.mxu0 0.0
    %1856 = vmatpush2.msra.mxu0 0.0
    %1857 = vmatprep.subr.mxu0 0.0
    %1858 = vmatpush2.msra.mxu0 0.0
    %1859 = vmatprep.subr.mxu0 0.0
    %1860 = vmatpush2.msra.mxu0 0.0
    %1861 = vmatprep.subr.mxu0 0.0
    %1862 = vmatpush2.msra.mxu0 0.0
    %1863 = vmatprep.subr.mxu0 0.0
    %1864 = vmatpush2.msra.mxu0 0.0
    %1865 = vmatprep.subr.mxu0 0.0
    %1866 = vmatpush2.msra.mxu0 0.0
    %1867 = vmatprep.subr.mxu0 0.0
    %1868 = vmatpush2.msra.mxu0 0.0
    %1869 = vmatprep.mubr.f32.mxu0 0.0
    %1870 = vmatmul.mubr.f32.gmra.mxu0 %v773
    %v1871 = vpop.f32.mrf.mxu0
    %v1872 = vadd.f32 0.0, %v1871
    %v1873 = vpop.f32.mrf.mxu0
    %1874 = vdwg.mxu0
    %s1875 = scalar_lea.vmem %s3, 128
    %v1876 = vld [vmem:[%s1875] sm:$0xff]
    %v1877 = vld [vmem:[%s1875 + $0x8] sm:$0xff]
    %v1878 = vld [vmem:[%s1875 + $0x10] sm:$0xff]
    %v1879 = vld [vmem:[%s1875 + $0x18] sm:$0xff]
    %v1880 = vld [vmem:[%s1875 + $0x20] sm:$0xff]
    %v1881 = vld [vmem:[%s1875 + $0x28] sm:$0xff]
    %v1882 = vld [vmem:[%s1875 + $0x30] sm:$0xff]
    %v1883 = vld [vmem:[%s1875 + $0x38] sm:$0xff]
    %v1884 = vld [vmem:[%s1875 + $0x40] sm:$0xff]
    %v1885 = vld [vmem:[%s1875 + $0x48] sm:$0xff]
    %v1886 = vld [vmem:[%s1875 + $0x50] sm:$0xff]
    %v1887 = vld [vmem:[%s1875 + $0x58] sm:$0xff]
    %v1888 = vld [vmem:[%s1875 + $0x60] sm:$0xff]
    %v1889 = vld [vmem:[%s1875 + $0x68] sm:$0xff]
    %v1890 = vld [vmem:[%s1875 + $0x70] sm:$0xff]
    %v1891 = vld [vmem:[%s1875 + $0x78] sm:$0xff]
    %s1892 = scalar_lea.vmem %s4, 1
    %v1893 = vld [vmem:[%s1892] sm:$0x1]
    %v1895 = vlaneseq
    %v1896 = vshrl.u32 %v1895, 7
    %v1897 = vsub.s32 0, %v1896
    %v1898 = vrot.slane %v1893, %v1897
    %1900 = vmatprep.subr.mxu0 0.0
    %1901 = vmatpush1.msra.mxu0 %v1891
    %1902 = vmatprep.subr.mxu0 0.0
    %1903 = vmatpush1.msra.mxu0 %v1890
    %1904 = vmatprep.subr.mxu0 0.0
    %1905 = vmatpush1.msra.mxu0 %v1889
    %1906 = vmatprep.subr.mxu0 0.0
    %1907 = vmatpush1.msra.mxu0 %v1888
    %1908 = vmatprep.subr.mxu0 0.0
    %1909 = vmatpush1.msra.mxu0 %v1887
    %1910 = vmatprep.subr.mxu0 0.0
    %1911 = vmatpush1.msra.mxu0 %v1886
    %1912 = vmatprep.subr.mxu0 0.0
    %1913 = vmatpush1.msra.mxu0 %v1885
    %1914 = vmatprep.subr.mxu0 0.0
    %1915 = vmatpush1.msra.mxu0 %v1884
    %1916 = vmatprep.subr.mxu0 0.0
    %1917 = vmatpush1.msra.mxu0 %v1883
    %1918 = vmatprep.subr.mxu0 0.0
    %1919 = vmatpush1.msra.mxu0 %v1882
    %1920 = vmatprep.subr.mxu0 0.0
    %1921 = vmatpush1.msra.mxu0 %v1881
    %1922 = vmatprep.subr.mxu0 0.0
    %1923 = vmatpush1.msra.mxu0 %v1880
    %1924 = vmatprep.subr.mxu0 0.0
    %1925 = vmatpush1.msra.mxu0 %v1879
    %1926 = vmatprep.subr.mxu0 0.0
    %1927 = vmatpush1.msra.mxu0 %v1878
    %1928 = vmatprep.subr.mxu0 0.0
    %1929 = vmatpush1.msra.mxu0 %v1877
    %1930 = vmatprep.subr.mxu0 0.0
    %1931 = vmatpush1.msra.mxu0 %v1876
    %1932 = vmatprep.subr.mxu0 0.0
    %1933 = vmatpush2.msra.mxu0 0.0
    %1934 = vmatprep.subr.mxu0 0.0
    %1935 = vmatpush2.msra.mxu0 0.0
    %1936 = vmatprep.subr.mxu0 0.0
    %1937 = vmatpush2.msra.mxu0 0.0
    %1938 = vmatprep.subr.mxu0 0.0
    %1939 = vmatpush2.msra.mxu0 0.0
    %1940 = vmatprep.subr.mxu0 0.0
    %1941 = vmatpush2.msra.mxu0 0.0
    %1942 = vmatprep.subr.mxu0 0.0
    %1943 = vmatpush2.msra.mxu0 0.0
    %1944 = vmatprep.subr.mxu0 0.0
    %1945 = vmatpush2.msra.mxu0 0.0
    %1946 = vmatprep.subr.mxu0 0.0
    %1947 = vmatpush2.msra.mxu0 0.0
    %1948 = vmatprep.subr.mxu0 0.0
    %1949 = vmatpush2.msra.mxu0 0.0
    %1950 = vmatprep.subr.mxu0 0.0
    %1951 = vmatpush2.msra.mxu0 0.0
    %1952 = vmatprep.subr.mxu0 0.0
    %1953 = vmatpush2.msra.mxu0 0.0
    %1954 = vmatprep.subr.mxu0 0.0
    %1955 = vmatpush2.msra.mxu0 0.0
    %1956 = vmatprep.subr.mxu0 0.0
    %1957 = vmatpush2.msra.mxu0 0.0
    %1958 = vmatprep.subr.mxu0 0.0
    %1959 = vmatpush2.msra.mxu0 0.0
    %1960 = vmatprep.subr.mxu0 0.0
    %1961 = vmatpush2.msra.mxu0 0.0
    %1962 = vmatprep.subr.mxu0 0.0
    %1963 = vmatpush2.msra.mxu0 0.0
    %1964 = vmatprep.mubr.f32.mxu0 0.0
    %1965 = vmatmul.mubr.f32.gmra.mxu0 %v1872
    %v1966 = vpop.f32.mrf.mxu0
    %v1967 = vadd.f32 %v1898, %v1966
    %v1968 = vpop.f32.mrf.mxu0
    %1969 = vdwg.mxu0
    %v1970 = vmax.f32 %v1967, 0.0
    %s1971 = scalar_lea.vmem %s5, 2
    %v1972 = vld [vmem:[%s1971] sm:$0x3]
    %s1973 = scalar_lea.vmem %s6, 1
    %v1974 = vld [vmem:[%s1973] sm:$0x1]
    %v1976 = vlaneseq
    %v1977 = vshrl.u32 %v1976, 7
    %v1978 = vsub.s32 0, %v1977
    %v1979 = vrot.slane %v1974, %v1978
    %v1982 = vsel %vm947, %v1970, 0
    %v1985 = vsel %vm951, %v1972, 0
    %1987 = vmatprep.subr.mxu0 0.0
    %1988 = vmatpush1.msra.mxu0 0.0
    %1989 = vmatprep.subr.mxu0 0.0
    %1990 = vmatpush1.msra.mxu0 0.0
    %1991 = vmatprep.subr.mxu0 0.0
    %1992 = vmatpush1.msra.mxu0 0.0
    %1993 = vmatprep.subr.mxu0 0.0
    %1994 = vmatpush1.msra.mxu0 0.0
    %1995 = vmatprep.subr.mxu0 0.0
    %1996 = vmatpush1.msra.mxu0 0.0
    %1997 = vmatprep.subr.mxu0 0.0
    %1998 = vmatpush1.msra.mxu0 0.0
    %1999 = vmatprep.subr.mxu0 0.0
    %2000 = vmatpush1.msra.mxu0 0.0
    %2001 = vmatprep.subr.mxu0 0.0
    %2002 = vmatpush1.msra.mxu0 0.0
    %2003 = vmatprep.subr.mxu0 0.0
    %2004 = vmatpush1.msra.mxu0 0.0
    %2005 = vmatprep.subr.mxu0 0.0
    %2006 = vmatpush1.msra.mxu0 0.0
    %2007 = vmatprep.subr.mxu0 0.0
    %2008 = vmatpush1.msra.mxu0 0.0
    %2009 = vmatprep.subr.mxu0 0.0
    %2010 = vmatpush1.msra.mxu0 0.0
    %2011 = vmatprep.subr.mxu0 0.0
    %2012 = vmatpush1.msra.mxu0 0.0
    %2013 = vmatprep.subr.mxu0 0.0
    %2014 = vmatpush1.msra.mxu0 0.0
    %2015 = vmatprep.subr.mxu0 0.0
    %2016 = vmatpush1.msra.mxu0 0.0
    %2017 = vmatprep.subr.mxu0 0.0
    %2018 = vmatpush1.msra.mxu0 %v1985
    %2019 = vmatprep.subr.mxu0 0.0
    %2020 = vmatpush2.msra.mxu0 0.0
    %2021 = vmatprep.subr.mxu0 0.0
    %2022 = vmatpush2.msra.mxu0 0.0
    %2023 = vmatprep.subr.mxu0 0.0
    %2024 = vmatpush2.msra.mxu0 0.0
    %2025 = vmatprep.subr.mxu0 0.0
    %2026 = vmatpush2.msra.mxu0 0.0
    %2027 = vmatprep.subr.mxu0 0.0
    %2028 = vmatpush2.msra.mxu0 0.0
    %2029 = vmatprep.subr.mxu0 0.0
    %2030 = vmatpush2.msra.mxu0 0.0
    %2031 = vmatprep.subr.mxu0 0.0
    %2032 = vmatpush2.msra.mxu0 0.0
    %2033 = vmatprep.subr.mxu0 0.0
    %2034 = vmatpush2.msra.mxu0 0.0
    %2035 = vmatprep.subr.mxu0 0.0
    %2036 = vmatpush2.msra.mxu0 0.0
    %2037 = vmatprep.subr.mxu0 0.0
    %2038 = vmatpush2.msra.mxu0 0.0
    %2039 = vmatprep.subr.mxu0 0.0
    %2040 = vmatpush2.msra.mxu0 0.0
    %2041 = vmatprep.subr.mxu0 0.0
    %2042 = vmatpush2.msra.mxu0 0.0
    %2043 = vmatprep.subr.mxu0 0.0
    %2044 = vmatpush2.msra.mxu0 0.0
    %2045 = vmatprep.subr.mxu0 0.0
    %2046 = vmatpush2.msra.mxu0 0.0
    %2047 = vmatprep.subr.mxu0 0.0
    %2048 = vmatpush2.msra.mxu0 0.0
    %2049 = vmatprep.subr.mxu0 0.0
    %2050 = vmatpush2.msra.mxu0 0.0
    %2051 = vmatprep.mubr.f32.mxu0 0.0
    %2052 = vmatmul.mubr.f32.gmra.mxu0 %v1982
    %v2053 = vpop.f32.mrf.mxu0
    %v2054 = vadd.f32 %v1979, %v2053
    %v2055 = vpop.f32.mrf.mxu0
    %2056 = vdwg.mxu0
    %v2057 = vxor.u32 %v2054, 2147483648
    %v2058 = vmul.f32 %v2057, 1.442695
    %v2059 = vpow.pop %v2058
    %v2060 = vadd.f32 %v2059, 1.0
    %v2061 = vrcp.pop %v2060
    %v2062 = vmul.f32 1.0, %v2061
    %v2064 = vsel %vm951, %v2062, 0
    %2066 = vmatprep.subr.mxu0 0.0
    %2067 = vmatpush1.msra.mxu0 0.0
    %2068 = vmatprep.subr.mxu0 0.0
    %2069 = vmatpush1.msra.mxu0 0.0
    %2070 = vmatprep.subr.mxu0 0.0
    %2071 = vmatpush1.msra.mxu0 0.0
    %2072 = vmatprep.subr.mxu0 0.0
    %2073 = vmatpush1.msra.mxu0 0.0
    %2074 = vmatprep.subr.mxu0 0.0
    %2075 = vmatpush1.msra.mxu0 0.0
    %2076 = vmatprep.subr.mxu0 0.0
    %2077 = vmatpush1.msra.mxu0 0.0
    %2078 = vmatprep.subr.mxu0 0.0
    %2079 = vmatpush1.msra.mxu0 0.0
    %2080 = vmatprep.subr.mxu0 0.0
    %2081 = vmatpush1.msra.mxu0 0.0
    %2082 = vmatprep.subr.mxu0 0.0
    %2083 = vmatpush1.msra.mxu0 0.0
    %2084 = vmatprep.subr.mxu0 0.0
    %2085 = vmatpush1.msra.mxu0 0.0
    %2086 = vmatprep.subr.mxu0 0.0
    %2087 = vmatpush1.msra.mxu0 0.0
    %2088 = vmatprep.subr.mxu0 0.0
    %2089 = vmatpush1.msra.mxu0 0.0
    %2090 = vmatprep.subr.mxu0 0.0
    %2091 = vmatpush1.msra.mxu0 0.0
    %2092 = vmatprep.subr.mxu0 0.0
    %2093 = vmatpush1.msra.mxu0 0.0
    %2094 = vmatprep.subr.mxu0 0.0
    %2095 = vmatpush1.msra.mxu0 0.0
    %2096 = vmatprep.subr.mxu0 0.0
    %2097 = vmatpush1.msra.mxu0 %v2064
    %2098 = vmatprep.subr.mxu0 0.0
    %2099 = vmatpush2.msra.mxu0 0.0
    %2100 = vmatprep.subr.mxu0 0.0
    %2101 = vmatpush2.msra.mxu0 0.0
    %2102 = vmatprep.subr.mxu0 0.0
    %2103 = vmatpush2.msra.mxu0 0.0
    %2104 = vmatprep.subr.mxu0 0.0
    %2105 = vmatpush2.msra.mxu0 0.0
    %2106 = vmatprep.subr.mxu0 0.0
    %2107 = vmatpush2.msra.mxu0 0.0
    %2108 = vmatprep.subr.mxu0 0.0
    %2109 = vmatpush2.msra.mxu0 0.0
    %2110 = vmatprep.subr.mxu0 0.0
    %2111 = vmatpush2.msra.mxu0 0.0
    %2112 = vmatprep.subr.mxu0 0.0
    %2113 = vmatpush2.msra.mxu0 0.0
    %2114 = vmatprep.subr.mxu0 0.0
    %2115 = vmatpush2.msra.mxu0 0.0
    %2116 = vmatprep.subr.mxu0 0.0
    %2117 = vmatpush2.msra.mxu0 0.0
    %2118 = vmatprep.subr.mxu0 0.0
    %2119 = vmatpush2.msra.mxu0 0.0
    %2120 = vmatprep.subr.mxu0 0.0
    %2121 = vmatpush2.msra.mxu0 0.0
    %2122 = vmatprep.subr.mxu0 0.0
    %2123 = vmatpush2.msra.mxu0 0.0
    %2124 = vmatprep.subr.mxu0 0.0
    %2125 = vmatpush2.msra.mxu0 0.0
    %2126 = vmatprep.subr.mxu0 0.0
    %2127 = vmatpush2.msra.mxu0 0.0
    %2128 = vmatprep.subr.mxu0 0.0
    %2129 = vmatpush2.msra.mxu0 0.0
    %2130 = vmatprep.mubr.f32.mxu0 0.0
    %2131 = vmatmul.mubr.f32.gmra.mxu0 %v1036
    %v2132 = vpop.f32.mrf.mxu0
    %v2133 = vadd.f32 0.0, %v2132
    %v2134 = vpop.f32.mrf.mxu0
    %2135 = vmatprep.mubr.f32.mxu0 0.0
    %2136 = vmatmul.mubr.f32.gmra.mxu0 %v1039
    %v2137 = vpop.f32.mrf.mxu0
    %v2138 = vadd.f32 0.0, %v2137
    %v2139 = vpop.f32.mrf.mxu0
    %2140 = vmatprep.mubr.f32.mxu0 0.0
    %2141 = vmatmul.mubr.f32.gmra.mxu0 %v1042
    %v2142 = vpop.f32.mrf.mxu0
    %v2143 = vadd.f32 0.0, %v2142
    %v2144 = vpop.f32.mrf.mxu0
    %2145 = vmatprep.mubr.f32.mxu0 0.0
    %2146 = vmatmul.mubr.f32.gmra.mxu0 %v1045
    %v2147 = vpop.f32.mrf.mxu0
    %v2148 = vadd.f32 0.0, %v2147
    %v2149 = vpop.f32.mrf.mxu0
    %2150 = vdwg.mxu0
    %v2151 = vmul.f32 %v1791, %v2133
    %v2152 = vmul.f32 %v1794, %v2138
    %v2153 = vmul.f32 %v1799, %v2143
    %v2154 = vmul.f32 %v1802, %v2148
    %v2155 = vadd.f32 %v2151, %v1139
    %v2156 = vadd.f32 %v2152, %v1140
    %v2157 = vadd.f32 %v2153, %v1141
    %v2158 = vadd.f32 %v2154, %v1142
    %v2159 = vrot.slane %v2155, 7
    %v2160 = vrot.slane %v2156, 7
    %v2161 = vrot.slane %v2157, 7
    %v2162 = vrot.slane %v2158, 7
    %v2163 = vsel %vm72, %v2161, %v2162
    %v2164 = vsel %vm72, %v2160, %v2161
    %v2165 = vsel %vm72, %v2159, %v2160
    %v2166 = vsel %vm72, %v2162, %v2159
    %v2167 = vmul.f32 %v2166, %v80
    %v2168 = vmul.f32 %v2165, %v85
    %v2169 = vmul.f32 %v2164, %v90
    %v2170 = vmul.f32 %v2163, %v95
    %v2171 = vrot.slane %v2155, 1
    %v2172 = vrot.slane %v2156, 1
    %v2173 = vrot.slane %v2157, 1
    %v2174 = vrot.slane %v2158, 1
    %v2175 = vsel %vm105, %v2173, %v2174
    %v2176 = vsel %vm105, %v2172, %v2173
    %v2177 = vsel %vm105, %v2171, %v2172
    %v2178 = vsel %vm105, %v2174, %v2171
    %v2179 = vmul.f32 %v2177, %v113
    %v2180 = vmul.f32 %v2176, %v118
    %v2181 = vmul.f32 %v2175, %v123
    %v2182 = vmul.f32 %v2178, %v128
    %v2183 = vpack.c.bf16 %v2168, %v2167
    %v2184 = vpack.c.bf16 %v2156, %v2155
    %v2185 = vpack.c.bf16 %v2180, %v2179
    %v2186 = vpack.c.bf16 %v2170, %v2169
    %v2187 = vpack.c.bf16 %v2158, %v2157
    %v2188 = vpack.c.bf16 %v2182, %v2181
    %s2189 = scalar_lea.vmem [#allocation2], 768
    %v2190 = vld [vmem:[%s2189] sm:$0xf]
    %v2191 = vld [vmem:[%s2189 + $0x4] sm:$0xf]
    %v2192 = vld [vmem:[%s2189 + $0x8] sm:$0xf]
    %v2193 = vld [vmem:[%s2189 + $0xc] sm:$0xf]
    %v2194 = vld [vmem:[%s2189 + $0x10] sm:$0xf]
    %v2195 = vld [vmem:[%s2189 + $0x14] sm:$0xf]
    %v2196 = vld [vmem:[%s2189 + $0x18] sm:$0xf]
    %v2197 = vld [vmem:[%s2189 + $0x1c] sm:$0xf]
    %v2198 = vld [vmem:[%s2189 + $0x20] sm:$0xf]
    %v2199 = vld [vmem:[%s2189 + $0x24] sm:$0xf]
    %v2200 = vld [vmem:[%s2189 + $0x28] sm:$0xf]
    %v2201 = vld [vmem:[%s2189 + $0x2c] sm:$0xf]
    %v2202 = vld [vmem:[%s2189 + $0x30] sm:$0xf]
    %v2203 = vld [vmem:[%s2189 + $0x34] sm:$0xf]
    %v2204 = vld [vmem:[%s2189 + $0x38] sm:$0xf]
    %v2205 = vld [vmem:[%s2189 + $0x3c] sm:$0xf]
    %v2206 = vld [vmem:[%s2189 + $0x40] sm:$0xf]
    %v2207 = vld [vmem:[%s2189 + $0x44] sm:$0xf]
    %v2208 = vld [vmem:[%s2189 + $0x48] sm:$0xf]
    %v2209 = vld [vmem:[%s2189 + $0x4c] sm:$0xf]
    %v2210 = vld [vmem:[%s2189 + $0x50] sm:$0xf]
    %v2211 = vld [vmem:[%s2189 + $0x54] sm:$0xf]
    %v2212 = vld [vmem:[%s2189 + $0x58] sm:$0xf]
    %v2213 = vld [vmem:[%s2189 + $0x5c] sm:$0xf]
    %v2214 = vld [vmem:[%s2189 + $0x60] sm:$0xf]
    %v2215 = vld [vmem:[%s2189 + $0x64] sm:$0xf]
    %v2216 = vld [vmem:[%s2189 + $0x68] sm:$0xf]
    %v2217 = vld [vmem:[%s2189 + $0x6c] sm:$0xf]
    %v2218 = vld [vmem:[%s2189 + $0x70] sm:$0xf]
    %v2219 = vld [vmem:[%s2189 + $0x74] sm:$0xf]
    %v2220 = vld [vmem:[%s2189 + $0x78] sm:$0xf]
    %v2221 = vld [vmem:[%s2189 + $0x7c] sm:$0xf]
    %v2222 = vld [vmem:[%s2189 + $0x80] sm:$0xf]
    %v2223 = vld [vmem:[%s2189 + $0x84] sm:$0xf]
    %v2224 = vld [vmem:[%s2189 + $0x88] sm:$0xf]
    %v2225 = vld [vmem:[%s2189 + $0x8c] sm:$0xf]
    %v2226 = vld [vmem:[%s2189 + $0x90] sm:$0xf]
    %v2227 = vld [vmem:[%s2189 + $0x94] sm:$0xf]
    %v2228 = vld [vmem:[%s2189 + $0x98] sm:$0xf]
    %v2229 = vld [vmem:[%s2189 + $0x9c] sm:$0xf]
    %v2230 = vld [vmem:[%s2189 + $0xa0] sm:$0xf]
    %v2231 = vld [vmem:[%s2189 + $0xa4] sm:$0xf]
    %v2232 = vld [vmem:[%s2189 + $0xa8] sm:$0xf]
    %v2233 = vld [vmem:[%s2189 + $0xac] sm:$0xf]
    %v2234 = vld [vmem:[%s2189 + $0xb0] sm:$0xf]
    %v2235 = vld [vmem:[%s2189 + $0xb4] sm:$0xf]
    %v2236 = vld [vmem:[%s2189 + $0xb8] sm:$0xf]
    %v2237 = vld [vmem:[%s2189 + $0xbc] sm:$0xf]
    %s2238 = scalar_lea.vmem %s2, 4
    %v2239 = vld [vmem:[%s2238] sm:$0x1]
    %v2241 = vlaneseq
    %v2242 = vshrl.u32 %v2241, 7
    %v2243 = vsub.s32 0, %v2242
    %v2244 = vrot.slane %v2239, %v2243
    %v2294 = vunpack.c.l.b16 %v2190
    %v2295 = vunpack.c.l.b16 %v2191
    %v2296 = vunpack.c.l.b16 %v2192
    %v2297 = vunpack.c.l.b16 %v2193
    %v2298 = vunpack.c.l.b16 %v2194
    %v2299 = vunpack.c.l.b16 %v2195
    %v2300 = vunpack.c.l.b16 %v2196
    %v2301 = vunpack.c.l.b16 %v2197
    %v2302 = vunpack.c.l.b16 %v2198
    %v2303 = vunpack.c.l.b16 %v2199
    %v2304 = vunpack.c.l.b16 %v2200
    %v2305 = vunpack.c.l.b16 %v2201
    %v2306 = vunpack.c.l.b16 %v2202
    %v2307 = vunpack.c.l.b16 %v2203
    %v2308 = vunpack.c.l.b16 %v2204
    %v2309 = vunpack.c.l.b16 %v2205
    %v2310 = vunpack.c.l.b16 %v2206
    %v2311 = vunpack.c.l.b16 %v2207
    %v2312 = vunpack.c.l.b16 %v2208
    %v2313 = vunpack.c.l.b16 %v2209
    %v2314 = vunpack.c.l.b16 %v2210
    %v2315 = vunpack.c.l.b16 %v2211
    %v2316 = vunpack.c.l.b16 %v2212
    %v2317 = vunpack.c.l.b16 %v2213
    %v2318 = vunpack.c.l.b16 %v2214
    %v2319 = vunpack.c.l.b16 %v2215
    %v2320 = vunpack.c.l.b16 %v2216
    %v2321 = vunpack.c.l.b16 %v2217
    %v2322 = vunpack.c.l.b16 %v2218
    %v2323 = vunpack.c.l.b16 %v2219
    %v2324 = vunpack.c.l.b16 %v2220
    %v2325 = vunpack.c.l.b16 %v2221
    %v2326 = vunpack.c.l.b16 %v2222
    %v2327 = vunpack.c.l.b16 %v2223
    %v2328 = vunpack.c.l.b16 %v2224
    %v2329 = vunpack.c.l.b16 %v2225
    %v2330 = vunpack.c.l.b16 %v2226
    %v2331 = vunpack.c.l.b16 %v2227
    %v2332 = vunpack.c.l.b16 %v2228
    %v2333 = vunpack.c.l.b16 %v2229
    %v2334 = vunpack.c.l.b16 %v2230
    %v2335 = vunpack.c.l.b16 %v2231
    %v2336 = vunpack.c.l.b16 %v2232
    %v2337 = vunpack.c.l.b16 %v2233
    %v2338 = vunpack.c.l.b16 %v2234
    %v2339 = vunpack.c.l.b16 %v2235
    %v2340 = vunpack.c.l.b16 %v2236
    %v2341 = vunpack.c.l.b16 %v2237
    %v2342 = vpack.c.b16 %v2295, %v2294
    %v2343 = vpack.c.b16 %v2297, %v2296
    %v2344 = vpack.c.b16 %v2299, %v2298
    %v2345 = vpack.c.b16 %v2301, %v2300
    %v2346 = vpack.c.b16 %v2303, %v2302
    %v2347 = vpack.c.b16 %v2305, %v2304
    %v2348 = vpack.c.b16 %v2307, %v2306
    %v2349 = vpack.c.b16 %v2309, %v2308
    %v2350 = vpack.c.b16 %v2311, %v2310
    %v2351 = vpack.c.b16 %v2313, %v2312
    %v2352 = vpack.c.b16 %v2315, %v2314
    %v2353 = vpack.c.b16 %v2317, %v2316
    %v2354 = vpack.c.b16 %v2319, %v2318
    %v2355 = vpack.c.b16 %v2321, %v2320
    %v2356 = vpack.c.b16 %v2323, %v2322
    %v2357 = vpack.c.b16 %v2325, %v2324
    %v2358 = vpack.c.b16 %v2327, %v2326
    %v2359 = vpack.c.b16 %v2329, %v2328
    %v2360 = vpack.c.b16 %v2331, %v2330
    %v2361 = vpack.c.b16 %v2333, %v2332
    %v2362 = vpack.c.b16 %v2335, %v2334
    %v2363 = vpack.c.b16 %v2337, %v2336
    %v2364 = vpack.c.b16 %v2339, %v2338
    %v2365 = vpack.c.b16 %v2341, %v2340
    %2390 = vmatprep.subr.bf16.mxu0 0
    %2391 = vmatpush1.bf16.msra.mxu0 %v2349
    %2392 = vmatprep.subr.bf16.mxu0 0
    %2393 = vmatpush1.bf16.msra.mxu0 %v2348
    %2394 = vmatprep.subr.bf16.mxu0 0
    %2395 = vmatpush1.bf16.msra.mxu0 %v2347
    %2396 = vmatprep.subr.bf16.mxu0 0
    %2397 = vmatpush1.bf16.msra.mxu0 %v2346
    %2398 = vmatprep.subr.bf16.mxu0 0
    %2399 = vmatpush1.bf16.msra.mxu0 %v2345
    %2400 = vmatprep.subr.bf16.mxu0 0
    %2401 = vmatpush1.bf16.msra.mxu0 %v2344
    %2402 = vmatprep.subr.bf16.mxu0 0
    %2403 = vmatpush1.bf16.msra.mxu0 %v2343
    %2404 = vmatprep.subr.bf16.mxu0 0
    %2405 = vmatpush1.bf16.msra.mxu0 %v2342
    %2406 = vmatprep.subr.bf16.mxu0 0
    %2407 = vmatpush2.bf16.msra.mxu0 %v2357
    %2408 = vmatprep.subr.bf16.mxu0 0
    %2409 = vmatpush2.bf16.msra.mxu0 %v2356
    %2410 = vmatprep.subr.bf16.mxu0 0
    %2411 = vmatpush2.bf16.msra.mxu0 %v2355
    %2412 = vmatprep.subr.bf16.mxu0 0
    %2413 = vmatpush2.bf16.msra.mxu0 %v2354
    %2414 = vmatprep.subr.bf16.mxu0 0
    %2415 = vmatpush2.bf16.msra.mxu0 %v2353
    %2416 = vmatprep.subr.bf16.mxu0 0
    %2417 = vmatpush2.bf16.msra.mxu0 %v2352
    %2418 = vmatprep.subr.bf16.mxu0 0
    %2419 = vmatpush2.bf16.msra.mxu0 %v2351
    %2420 = vmatprep.subr.bf16.mxu0 0
    %2421 = vmatpush2.bf16.msra.mxu0 %v2350
    %2422 = vmatprep.mubr.bf16.mxu0 %v2184
    %2423 = vmatmul.mubr.bf16.gmra.mxu0 %v2183
    %v2424 = vpop.f32.mrf.mxu0
    %v2425 = vadd.f32 %v2244, %v2424
    %v2426 = vpop.f32.mrf.mxu0
    %v2427 = vpop.f32.mrf.mxu0
    %v2428 = vadd.f32 %v2244, %v2427
    %v2429 = vpop.f32.mrf.mxu0
    %2430 = vmatprep.mubr.bf16.mxu0 %v2187
    %2431 = vmatmul.mubr.bf16.gmra.mxu0 %v2186
    %v2432 = vpop.f32.mrf.mxu0
    %v2433 = vadd.f32 %v2244, %v2432
    %v2434 = vpop.f32.mrf.mxu0
    %v2435 = vpop.f32.mrf.mxu0
    %v2436 = vadd.f32 %v2244, %v2435
    %v2437 = vpop.f32.mrf.mxu0
    %2438 = vdwg.mxu0
    %2439 = vmatprep.subr.bf16.mxu0 0
    %2440 = vmatpush1.bf16.msra.mxu0 %v2365
    %2441 = vmatprep.subr.bf16.mxu0 0
    %2442 = vmatpush1.bf16.msra.mxu0 %v2364
    %2443 = vmatprep.subr.bf16.mxu0 0
    %2444 = vmatpush1.bf16.msra.mxu0 %v2363
    %2445 = vmatprep.subr.bf16.mxu0 0
    %2446 = vmatpush1.bf16.msra.mxu0 %v2362
    %2447 = vmatprep.subr.bf16.mxu0 0
    %2448 = vmatpush1.bf16.msra.mxu0 %v2361
    %2449 = vmatprep.subr.bf16.mxu0 0
    %2450 = vmatpush1.bf16.msra.mxu0 %v2360
    %2451 = vmatprep.subr.bf16.mxu0 0
    %2452 = vmatpush1.bf16.msra.mxu0 %v2359
    %2453 = vmatprep.subr.bf16.mxu0 0
    %2454 = vmatpush1.bf16.msra.mxu0 %v2358
    %2455 = vmatprep.subr.bf16.mxu0 0
    %2456 = vmatpush2.bf16.msra.mxu0 0
    %2457 = vmatprep.subr.bf16.mxu0 0
    %2458 = vmatpush2.bf16.msra.mxu0 0
    %2459 = vmatprep.subr.bf16.mxu0 0
    %2460 = vmatpush2.bf16.msra.mxu0 0
    %2461 = vmatprep.subr.bf16.mxu0 0
    %2462 = vmatpush2.bf16.msra.mxu0 0
    %2463 = vmatprep.subr.bf16.mxu0 0
    %2464 = vmatpush2.bf16.msra.mxu0 0
    %2465 = vmatprep.subr.bf16.mxu0 0
    %2466 = vmatpush2.bf16.msra.mxu0 0
    %2467 = vmatprep.subr.bf16.mxu0 0
    %2468 = vmatpush2.bf16.msra.mxu0 0
    %2469 = vmatprep.subr.bf16.mxu0 0
    %2470 = vmatpush2.bf16.msra.mxu0 0
    %2471 = vmatprep.mubr.bf16.mxu0 0
    %2472 = vmatmul.mubr.bf16.gmra.mxu0 %v2185
    %v2473 = vpop.f32.mrf.mxu0
    %v2474 = vadd.f32 %v2425, %v2473
    %v2475 = vpop.f32.mrf.mxu0
    %v2476 = vpop.f32.mrf.mxu0
    %v2477 = vadd.f32 %v2428, %v2476
    %v2478 = vpop.f32.mrf.mxu0
    %2479 = vmatprep.mubr.bf16.mxu0 0
    %2480 = vmatmul.mubr.bf16.gmra.mxu0 %v2188
    %v2481 = vpop.f32.mrf.mxu0
    %v2482 = vadd.f32 %v2433, %v2481
    %v2483 = vpop.f32.mrf.mxu0
    %v2484 = vpop.f32.mrf.mxu0
    %v2485 = vadd.f32 %v2436, %v2484
    %v2486 = vpop.f32.mrf.mxu0
    %2487 = vdwg.mxu0
    %v2488 = vadd.f32 %v2474, %v62
    %v2489 = vadd.f32 %v2477, %v63
    %v2490 = vadd.f32 %v2482, %v64
    %v2491 = vadd.f32 %v2485, %v65
    %2492 = vst [vmem:[#allocation5] sm:$0xff] %v2488
    %2493 = vst [vmem:[#allocation5 + $0x8] sm:$0xff] %v2489
    %2494 = vst [vmem:[#allocation5 + $0x10] sm:$0xff] %v2490
    %2495 = vst [vmem:[#allocation5 + $0x18] sm:$0xff] %v2491
    // Predicated region
    $region50: #{tpu_custom_call.1} parent=1 // pred_check
      _
    $region51: #{tpu_custom_call.1} parent=1 // pred_check_branch
      %2497 = sbr.rel (0) target = $region53
    $region52: #{tpu_custom_call.1} parent=1 // pred_region
      %s2499 = ssub.s32 512, 512
      %2500 = vsyncadd [#allocation4], %s2499
      %s2501 = sshll.u32 [#allocation5], 4
      %s2502 = int_to_ptr.vmem [resolvable:$true] %s2501
      %2507 = dma.vmem_to_hbm [thread:$0]  %s2502, 512, %s11, [#allocation4], 128, 128, 8
    $region53: #{tpu_custom_call.1} parent=1 // pred_fallthru
      _
    // Predicated region
    $region54: #{tpu_custom_call.1} parent=1 // pred_check
      _
    $region55: #{tpu_custom_call.1} parent=1 // pred_check_branch
      %2509 = sbr.rel (0) target = $region57
    $region56: #{tpu_custom_call.1} parent=1 // pred_region
      %2510 = dma.done [#allocation4], 512
    $region57: #{tpu_custom_call.1} parent=1 // pred_fallthru
      _
    %2511 = vsyncpa [#allocation3], 1
    %2512 = vsyncpa [#allocation4], 1

</llo_original>
